<compile_context>
chip_gen: v6e
topology: v6e:2x2x1
jax: 0.10.0
libtpu: 0.0.40
codegen_flags: <defaults>
</compile_context>

<pallas_src>
import functools

import jax
import jax.numpy as jnp
from jax.experimental import pallas as pl
from jax.experimental.pallas import tpu as pltpu


def _ff_kernel(x_ref, w1_ref, b1_ref, w2_ref, b2_ref, o_ref, acc_ref):
    # x_ref : (tm, d_model) bf16        w1_ref: (d_model, tk) bf16
    # b1_ref: (1, tk) f32               w2_ref: (tk, d_model) bf16
    # b2_ref: (1, d_model) f32          o_ref : (tm, d_model) f32
    # acc_ref: (tm, d_model) f32 scratch, persistent across the dff (k) axis.
    k = pl.program_id(1)

    @pl.when(k == 0)
    def _init():
        acc_ref[...] = jnp.zeros_like(acc_ref)

    # Hidden chunk: relu(x @ W1[:, k-chunk] + b1[k-chunk]), f32 MXU accumulate.
    h = jnp.dot(x_ref[...], w1_ref[...], preferred_element_type=jnp.float32)
    h = jnp.maximum(h + b1_ref[...], 0.0)
    # Dropout: identity (inference mode).

    # Partial second matmul for this dff chunk; accumulate in f32 scratch.
    acc_ref[...] += jnp.dot(h.astype(w2_ref.dtype), w2_ref[...],
                            preferred_element_type=jnp.float32)

    @pl.when(k == pl.num_programs(1) - 1)
    def _finalize():
        # bias2 added exactly once, on the last reduction step.
        o_ref[...] = (acc_ref[...] + b2_ref[...]).astype(o_ref.dtype)


@functools.partial(jax.jit, static_argnames=("tm", "tk"))
def feed_forward(x, w1, b1, w2, b2, *, tm=256, tk=512):
    """x: [batch, seq, d_model] float32. Returns same shape/dtype.

    w1: [d_model, dff], b1: [dff], w2: [dff, d_model], b2: [d_model]
    (weights stored as [in, out], i.e. transpose of nn.Linear.weight).
    """
    batch, seq, d_model = x.shape
    dff = w1.shape[1]
    M = batch * seq

    tm = min(tm, M)
    tk = min(tk, dff)
    assert M % tm == 0 and tm % 16 == 0, "token tile must divide M, mult of 16"
    assert dff % tk == 0 and tk % 128 == 0, "dff tile must divide dff, mult of 128"

    # bf16 on the MXU, f32 accumulation.
    x2d = x.reshape(M, d_model).astype(jnp.bfloat16)
    w1b = w1.astype(jnp.bfloat16)
    w2b = w2.astype(jnp.bfloat16)
    b1_2d = b1.reshape(1, dff).astype(jnp.float32)
    b2_2d = b2.reshape(1, d_model).astype(jnp.float32)

    grid = (M // tm, dff // tk)

    # VMEM footprint: double-buffered tiles + f32 accumulator + h headroom.
    bf16, f32 = 2, 4
    vmem_bytes = (
        2 * tm * d_model * bf16        # x tile
        + 2 * d_model * tk * bf16      # W1 chunk
        + 2 * tk * d_model * bf16      # W2 chunk
        + 2 * tk * f32                 # b1 chunk
        + 2 * d_model * f32            # b2
        + 2 * tm * d_model * f32       # output tile
        + tm * d_model * f32           # accumulator scratch
        + tm * tk * (f32 + bf16)       # intermediate h (compiler spill room)
    )
    vmem_limit = min(int(vmem_bytes) * 2 + (8 << 20), 100 << 20)

    cost = pl.CostEstimate(
        flops=4 * M * d_model * dff,   # two matmuls, 2*M*N*K each
        transcendentals=0,
        bytes_accessed=(M * d_model * bf16        # x in
                        + d_model * dff * bf16    # W1
                        + dff * d_model * bf16    # W2
                        + dff * f32 + d_model * f32
                        + M * d_model * f32),     # out
    )

    out2d = pl.pallas_call(
        _ff_kernel,
        out_shape=jax.ShapeDtypeStruct((M, d_model), x.dtype),
        grid_spec=pltpu.PrefetchScalarGridSpec(
            num_scalar_prefetch=0,
            grid=grid,
            in_specs=[
                pl.BlockSpec((tm, d_model), lambda i, k: (i, 0)),    # x tile
                pl.BlockSpec((d_model, tk), lambda i, k: (0, k)),    # W1 chunk
                pl.BlockSpec((1, tk), lambda i, k: (0, k)),          # b1 chunk
                pl.BlockSpec((tk, d_model), lambda i, k: (k, 0)),    # W2 chunk
                pl.BlockSpec((1, d_model), lambda i, k: (0, 0)),     # b2
            ],
            out_specs=pl.BlockSpec((tm, d_model), lambda i, k: (i, 0)),
            scratch_shapes=[pltpu.VMEM((tm, d_model), jnp.float32)],
        ),
        compiler_params=pltpu.CompilerParams(
            dimension_semantics=("parallel", "arbitrary"),
            vmem_limit_bytes=vmem_limit,
        ),
        cost_estimate=cost,
    )(x2d, w1b, b1_2d, w2b, b2_2d)

    return out2d.reshape(batch, seq, d_model)


def _init_params(key, d_model, dff):
    """Deterministic init mimicking nn.Linear default: U(-1/sqrt(fan_in), +)."""
    k1, k2, k3, k4 = jax.random.split(key, 4)
    lim1 = 1.0 / jnp.sqrt(d_model)
    lim2 = 1.0 / jnp.sqrt(dff)
    w1 = jax.random.uniform(k1, (d_model, dff), jnp.float32, -lim1, lim1)
    b1 = jax.random.uniform(k2, (dff,), jnp.float32, -lim1, lim1)
    w2 = jax.random.uniform(k3, (dff, d_model), jnp.float32, -lim2, lim2)
    b2 = jax.random.uniform(k4, (d_model,), jnp.float32, -lim2, lim2)
    return w1, b1, w2, b2


if __name__ == "__main__":
    # Small but lane/sublane-friendly shapes: M = 512 tokens, d_model = 128,
    # dff = 1024  ->  grid (M//tm, dff//tk) = (2, 2) exercises both axes.
    batch, seq, d_model, dff = 2, 256, 128, 1024

    key = jax.random.PRNGKey(0)
    kx, kp = jax.random.split(key)
    x = jax.random.normal(kx, (batch, seq, d_model), jnp.float32)
    w1, b1, w2, b2 = _init_params(kp, d_model, dff)

    out = feed_forward(x, w1, b1, w2, b2)
    out = jax.block_until_ready(out)

    # Pure-JAX reference with matching bf16-input / f32-accumulate semantics.
    xb = x.astype(jnp.bfloat16).astype(jnp.float32)
    w1r = w1.astype(jnp.bfloat16).astype(jnp.float32)
    w2r = w2.astype(jnp.bfloat16).astype(jnp.float32)
    h = jnp.maximum(xb @ w1r + b1, 0.0)
    ref = h.astype(jnp.bfloat16).astype(jnp.float32) @ w2r + b2

    assert out.shape == (batch, seq, d_model)
    err = float(jnp.max(jnp.abs(out - ref)))
    assert jnp.allclose(out, ref, atol=2e-2, rtol=2e-2), f"max abs err {err}"

    print("KERNEL_OK")
</pallas_src>

<mosaic_0001>
module attributes {stable_mosaic.version = 11 : i64} {
  func.func @_ff_kernel(%arg0: i32, %arg1: i32, %arg2: memref<256x128xbf16, #tpu.memory_space<vmem>>, %arg3: memref<128x512xbf16, #tpu.memory_space<vmem>>, %arg4: memref<1x512xf32, #tpu.memory_space<vmem>>, %arg5: memref<512x128xbf16, #tpu.memory_space<vmem>>, %arg6: memref<1x128xf32, #tpu.memory_space<vmem>>, %arg7: memref<256x128xf32, #tpu.memory_space<vmem>>, %arg8: memref<256x128xf32, #tpu.memory_space<vmem>>) attributes {dimension_semantics = [#tpu.dimension_semantics<parallel>, #tpu.dimension_semantics<arbitrary>], iteration_bounds = array<i64: 2, 2>, scalar_prefetch = 0 : i64, scratch_operands = 1 : i64, tpu.core_type = #tpu.core_type<tc>, window_params = [{transform_indices = @transform_0, window_bounds = array<i64: 256, 128>}, {transform_indices = @transform_1, window_bounds = array<i64: 128, 512>}, {transform_indices = @transform_2, window_bounds = array<i64: 1, 512>}, {transform_indices = @transform_3, window_bounds = array<i64: 512, 128>}, {pipeline_mode = #tpu.pipeline_mode<synchronous>, transform_indices = @transform_4, window_bounds = array<i64: 1, 128>}, {transform_indices = @transform_5, window_bounds = array<i64: 256, 128>}]} {
    %c0_i32 = arith.constant 0 : i32
    %0 = arith.cmpi eq, %arg1, %c0_i32 : i32
    %1 = arith.extui %0 : i1 to i32
    %c0_i32_0 = arith.constant 0 : i32
    %2 = arith.cmpi ne, %1, %c0_i32_0 : i32
    scf.if %2 {
      %cst_15 = arith.constant 0.000000e+00 : f32
      %20 = vector.broadcast %cst_15 : f32 to vector<256x128xf32>
      %c0_16 = arith.constant 0 : index
      %c0_17 = arith.constant 0 : index
      %21 = vector.load %arg8[%c0_16, %c0_17] : memref<256x128xf32, #tpu.memory_space<vmem>>, vector<256x128xf32>
      tpu.vector_store %arg8[%c0_16, %c0_17], %20 {strides = array<i32>} : memref<256x128xf32, #tpu.memory_space<vmem>>, vector<256x128xf32>,
    } else {
    }
    %c0 = arith.constant 0 : index
    %c0_1 = arith.constant 0 : index
    %3 = vector.load %arg2[%c0, %c0_1] : memref<256x128xbf16, #tpu.memory_space<vmem>>, vector<256x128xbf16>
    %c0_2 = arith.constant 0 : index
    %c0_3 = arith.constant 0 : index
    %4 = vector.load %arg3[%c0_2, %c0_3] : memref<128x512xbf16, #tpu.memory_space<vmem>>, vector<128x512xbf16>
    %cst = arith.constant dense<0.000000e+00> : vector<256x512xf32>
    %5 = tpu.matmul %3, %4, %cst {dimension_numbers = #tpu.dot_dimension_numbers<[1], [0], [0], [1], [0, 0, 1, 1], [], []>} : vector<256x128xbf16>, vector<128x512xbf16>, vector<256x512xf32> -> vector<256x512xf32>
    %c0_4 = arith.constant 0 : index
    %c0_5 = arith.constant 0 : index
    %6 = vector.load %arg4[%c0_4, %c0_5] : memref<1x512xf32, #tpu.memory_space<vmem>>, vector<1x512xf32>
    %7 = vector.broadcast %6 : vector<1x512xf32> to vector<256x512xf32>
    %8 = arith.addf %5, %7 : vector<256x512xf32>
    %cst_6 = arith.constant 0.000000e+00 : f32
    %9 = vector.broadcast %cst_6 : f32 to vector<256x512xf32>
    %10 = arith.maximumf %8, %9 : vector<256x512xf32>
    %c0_7 = arith.constant 0 : index
    %c0_8 = arith.constant 0 : index
    %11 = vector.load %arg8[%c0_7, %c0_8] : memref<256x128xf32, #tpu.memory_space<vmem>>, vector<256x128xf32>
    %12 = arith.truncf %10 : vector<256x512xf32> to vector<256x512xbf16>
    %c0_9 = arith.constant 0 : index
    %c0_10 = arith.constant 0 : index
    %13 = vector.load %arg5[%c0_9, %c0_10] : memref<512x128xbf16, #tpu.memory_space<vmem>>, vector<512x128xbf16>
    %cst_11 = arith.constant dense<0.000000e+00> : vector<256x128xf32>
    %14 = tpu.matmul %12, %13, %cst_11 {dimension_numbers = #tpu.dot_dimension_numbers<[1], [0], [0], [1], [0, 0, 1, 1], [], []>} : vector<256x512xbf16>, vector<512x128xbf16>, vector<256x128xf32> -> vector<256x128xf32>
    %15 = arith.addf %11, %14 : vector<256x128xf32>
    %c0_12 = arith.constant 0 : index
    %c0_13 = arith.constant 0 : index
    %16 = vector.load %arg8[%c0_12, %c0_13] : memref<256x128xf32, #tpu.memory_space<vmem>>, vector<256x128xf32>
    tpu.vector_store %arg8[%c0_12, %c0_13], %15 {strides = array<i32>} : memref<256x128xf32, #tpu.memory_space<vmem>>, vector<256x128xf32>,
    %c1_i32 = arith.constant 1 : i32
    %17 = arith.cmpi eq, %arg1, %c1_i32 : i32
    %18 = arith.extui %17 : i1 to i32
    %c0_i32_14 = arith.constant 0 : i32
    %19 = arith.cmpi ne, %18, %c0_i32_14 : i32
    scf.if %19 {
      %c0_15 = arith.constant 0 : index
      %c0_16 = arith.constant 0 : index
      %20 = vector.load %arg8[%c0_15, %c0_16] : memref<256x128xf32, #tpu.memory_space<vmem>>, vector<256x128xf32>
      %c0_17 = arith.constant 0 : index
      %c0_18 = arith.constant 0 : index
      %21 = vector.load %arg6[%c0_17, %c0_18] : memref<1x128xf32, #tpu.memory_space<vmem>>, vector<1x128xf32>
      %22 = vector.broadcast %21 : vector<1x128xf32> to vector<256x128xf32>
      %23 = arith.addf %20, %22 : vector<256x128xf32>
      %c0_19 = arith.constant 0 : index
      %c0_20 = arith.constant 0 : index
      %24 = vector.load %arg7[%c0_19, %c0_20] : memref<256x128xf32, #tpu.memory_space<vmem>>, vector<256x128xf32>
      tpu.vector_store %arg7[%c0_19, %c0_20], %23 {strides = array<i32>} : memref<256x128xf32, #tpu.memory_space<vmem>>, vector<256x128xf32>,
    } else {
    }
    return
  }
  func.func @transform_0(%arg0: i32, %arg1: i32) -> (i32, i32) {
    %c0_i32 = arith.constant 0 : i32
    %c0_i32_0 = arith.constant 0 : i32
    return %arg0, %c0_i32 : i32, i32
  }
  func.func @transform_1(%arg0: i32, %arg1: i32) -> (i32, i32) {
    %c0_i32 = arith.constant 0 : i32
    %c0_i32_0 = arith.constant 0 : i32
    return %c0_i32, %arg1 : i32, i32
  }
  func.func @transform_2(%arg0: i32, %arg1: i32) -> (i32, i32) {
    %c0_i32 = arith.constant 0 : i32
    %c0_i32_0 = arith.constant 0 : i32
    return %c0_i32, %arg1 : i32, i32
  }
  func.func @transform_3(%arg0: i32, %arg1: i32) -> (i32, i32) {
    %c0_i32 = arith.constant 0 : i32
    %c0_i32_0 = arith.constant 0 : i32
    return %arg1, %c0_i32 : i32, i32
  }
  func.func @transform_4(%arg0: i32, %arg1: i32) -> (i32, i32) {
    %c0_i32 = arith.constant 0 : i32
    %c0_i32_0 = arith.constant 0 : i32
    %c0_i32_1 = arith.constant 0 : i32
    return %c0_i32, %c0_i32_0 : i32, i32
  }
  func.func @transform_5(%arg0: i32, %arg1: i32) -> (i32, i32) {
    %c0_i32 = arith.constant 0 : i32
    %c0_i32_0 = arith.constant 0 : i32
    return %arg0, %c0_i32 : i32, i32
  }
}

</mosaic_0001>

<llo_original>
// kernel: feed_forward.1
$region0: #{feed_forward.1}
  #allocation0 [shape = 'u32[]', space=smem, size = 0x4, offset = 0x4, fixed_abs, tag = 'smem constant byte address 0x4 - core index']
  #allocation1 [shape = 'u32[144,128]{1,0:T(1,128)}', space=vmem, size = 0x12000, scoped, tag = 'internal scratch']
  #allocation2 [shape = 'f32[256,128]{1,0:T(8,128)}', space=vmem, size = 0x20000, scoped, tag = 'scratch operand']
  %s0 = inlined_call_operand.vmem [shape: bf16[512,128], index: 0, kind: input, shape index: {}]
  %s1 = inlined_call_operand.vmem [shape: bf16[128,1024], index: 1, kind: input, shape index: {}]
  %s2 = inlined_call_operand.vmem [shape: f32[1,1024], index: 2, kind: input, shape index: {}]
  %s3 = inlined_call_operand.vmem [shape: bf16[1024,128], index: 3, kind: input, shape index: {}]
  %s4 = inlined_call_operand.vmem [shape: f32[1,128], index: 4, kind: input, shape index: {}]
  %s5 = inlined_call_operand.hbm [shape: f32[512,128], index: 5, kind: output, shape index: {}]
  %s6 = sld [smem:[#allocation0]]
  $region84: #{feed_forward.1} parent=0
    _
  %s8 = ssub.s32 1, %s6
  %s9 = scalar_select 0, %s8, %s6
  $region1: #{feed_forward.1} parent=0
    #allocation3 [shape = 'u8[262144]{0}', space=vmem, size = 0x40000, scoped, tag = 'input window, operand 1']
    #allocation4 [shape = 'u8[262144]{0}', space=vmem, size = 0x40000, scoped, tag = 'output window, operand 0']
    #allocation5 [shape = 's32[2]{0}', space=sflag, size = 0x8, scoped, tag = 'scoped memory for feed_forward.1']
    %10 = vsyncpa [#allocation5], 0
    %s11 = scalar_lea.sflag [#allocation5], 1
    %12 = vsyncpa %s11, 0
    loop: start=0, step=1, limit=6
    $region2: #{feed_forward.1} parent=1 // loop_pre_header
      _
    $region3: #{feed_forward.1} parent=1 // loop_header
      %s14 = sphi 0, %s18
      %p15 = scmp.ge.s32.totalorder %s14, 6
      %s21 = sphi 0, %s33
      %s22 = sphi 0, %s29
      %s23 = sphi 0, %s21
      %s24 = sphi 0, %s22
      %s25 = sphi 0, %s23
      %s26 = sphi 0, %s24
      %s36 = sphi 0, %s38
      %s39 = sphi 0, %s36
      %s40 = sphi 0, %s39
      %s56 = sphi 0, %s40
      %s62 = sphi 0, %s64
      %s65 = sphi 0, %s62
      %s66 = sphi 0, %s65
      %s82 = sphi 0, %s66
      %s88 = sphi 0, %s90
      %s91 = sphi 0, %s88
      %s92 = sphi 0, %s91
      %s108 = sphi 0, %s92
      %s114 = sphi 0, %s116
      %s117 = sphi 0, %s114
      %s118 = sphi 0, %s117
      %s134 = sphi 0, %s118
      %s138 = sphi 0, %s138
      %s140 = sphi 0, %s138
      %s141 = sphi 0, %s140
      %s155 = sphi 0, %s141
      %s161 = sphi 0, %s163
      %s164 = sphi 0, %s161
      %s165 = sphi 0, %s164
      %s181 = sphi 0, %s165
    $region4: #{feed_forward.1} parent=1 // loop_header_branch
      %17 = sbr.rel (%p15) target = $region8
    $region5: #{feed_forward.1} parent=1 // loop_body
      %s19 = ssub.s32 %s14, 1
      %s20 = ssub.s32 %s14, 2
      %s27 = sadd.s32 1, %s22
      %p28 = scmp.ge.s32.totalorder %s27, 2
      %s29 = scalar_select %p28, 0, %s27
      %s30 = sadd.s32 1, %s21
      %s31 = scalar_select %p28, %s30, %s21
      %p32 = scmp.ge.s32.totalorder %s31, 2
      %s33 = scalar_select %p32, 0, %s31
      %s34 = ssub.s32 %s21, %s33
      %p35 = scmp.eq.s32.totalorder %s34, 0
      %s37 = sadd.s32 %s36, 1
      %s38 = scalar_select %p35, %s36, %s37
      %p41 = pneg %p35
      %p42 = scmp.eq.s32.totalorder %s14, 3
      %p43 = por %p41, %p42
      %p44 = scmp.ne.s32.totalorder %s36, %s39
      %p45 = scmp.eq.s32.totalorder %s14, 0
      %p46 = por %p44, %p45
      %p47 = scmp.ne.s32.totalorder %s36, %s39
      %p48 = scmp.eq.s32.totalorder %s19, 3
      %p49 = por %p47, %p48
      %p50 = scmp.ne.s32.totalorder %s39, %s40
      %p51 = scmp.eq.s32.totalorder %s19, 0
      %p52 = por %p50, %p51
      %p53 = scmp.ne.s32.totalorder %s39, %s40
      %p54 = scmp.eq.s32.totalorder %s20, 3
      %p55 = por %p53, %p54
      %p57 = scmp.ne.s32.totalorder %s40, %s56
      %p58 = scmp.eq.s32.totalorder %s20, 0
      %p59 = por %p57, %p58
      %s60 = ssub.s32 %s22, %s29
      %p61 = scmp.eq.s32.totalorder %s60, 0
      %s63 = sadd.s32 %s62, 1
      %s64 = scalar_select %p61, %s62, %s63
      %p67 = pneg %p61
      %p68 = scmp.eq.s32.totalorder %s14, 3
      %p69 = por %p67, %p68
      %p70 = scmp.ne.s32.totalorder %s62, %s65
      %p71 = scmp.eq.s32.totalorder %s14, 0
      %p72 = por %p70, %p71
      %p73 = scmp.ne.s32.totalorder %s62, %s65
      %p74 = scmp.eq.s32.totalorder %s19, 3
      %p75 = por %p73, %p74
      %p76 = scmp.ne.s32.totalorder %s65, %s66
      %p77 = scmp.eq.s32.totalorder %s19, 0
      %p78 = por %p76, %p77
      %p79 = scmp.ne.s32.totalorder %s65, %s66
      %p80 = scmp.eq.s32.totalorder %s20, 3
      %p81 = por %p79, %p80
      %p83 = scmp.ne.s32.totalorder %s66, %s82
      %p84 = scmp.eq.s32.totalorder %s20, 0
      %p85 = por %p83, %p84
      %s86 = ssub.s32 %s22, %s29
      %p87 = scmp.eq.s32.totalorder %s86, 0
      %s89 = sadd.s32 %s88, 1
      %s90 = scalar_select %p87, %s88, %s89
      %p93 = pneg %p87
      %p94 = scmp.eq.s32.totalorder %s14, 3
      %p95 = por %p93, %p94
      %p96 = scmp.ne.s32.totalorder %s88, %s91
      %p97 = scmp.eq.s32.totalorder %s14, 0
      %p98 = por %p96, %p97
      %p99 = scmp.ne.s32.totalorder %s88, %s91
      %p100 = scmp.eq.s32.totalorder %s19, 3
      %p101 = por %p99, %p100
      %p102 = scmp.ne.s32.totalorder %s91, %s92
      %p103 = scmp.eq.s32.totalorder %s19, 0
      %p104 = por %p102, %p103
      %p105 = scmp.ne.s32.totalorder %s91, %s92
      %p106 = scmp.eq.s32.totalorder %s20, 3
      %p107 = por %p105, %p106
      %p109 = scmp.ne.s32.totalorder %s92, %s108
      %p110 = scmp.eq.s32.totalorder %s20, 0
      %p111 = por %p109, %p110
      %s112 = ssub.s32 %s22, %s29
      %p113 = scmp.eq.s32.totalorder %s112, 0
      %s115 = sadd.s32 %s114, 1
      %s116 = scalar_select %p113, %s114, %s115
      %p119 = pneg %p113
      %p120 = scmp.eq.s32.totalorder %s14, 3
      %p121 = por %p119, %p120
      %p122 = scmp.ne.s32.totalorder %s114, %s117
      %p123 = scmp.eq.s32.totalorder %s14, 0
      %p124 = por %p122, %p123
      %p125 = scmp.ne.s32.totalorder %s114, %s117
      %p126 = scmp.eq.s32.totalorder %s19, 3
      %p127 = por %p125, %p126
      %p128 = scmp.ne.s32.totalorder %s117, %s118
      %p129 = scmp.eq.s32.totalorder %s19, 0
      %p130 = por %p128, %p129
      %p131 = scmp.ne.s32.totalorder %s117, %s118
      %p132 = scmp.eq.s32.totalorder %s20, 3
      %p133 = por %p131, %p132
      %p135 = scmp.ne.s32.totalorder %s118, %s134
      %p136 = scmp.eq.s32.totalorder %s20, 0
      %p137 = por %p135, %p136
      %s139 = sadd.s32 %s138, 1
      %p142 = scmp.eq.s32.totalorder %s14, 3
      %p143 = scmp.ne.s32.totalorder %s138, %s140
      %p144 = scmp.eq.s32.totalorder %s14, 0
      %p145 = por %p143, %p144
      %p146 = scmp.ne.s32.totalorder %s138, %s140
      %p147 = scmp.eq.s32.totalorder %s19, 3
      %p148 = por %p146, %p147
      %p149 = scmp.ne.s32.totalorder %s140, %s141
      %p150 = scmp.eq.s32.totalorder %s19, 0
      %p151 = por %p149, %p150
      %p152 = scmp.ne.s32.totalorder %s140, %s141
      %p153 = scmp.eq.s32.totalorder %s20, 3
      %p154 = por %p152, %p153
      %p156 = scmp.ne.s32.totalorder %s141, %s155
      %p157 = scmp.eq.s32.totalorder %s20, 0
      %p158 = por %p156, %p157
      %s159 = ssub.s32 %s21, %s33
      %p160 = scmp.eq.s32.totalorder %s159, 0
      %s162 = sadd.s32 %s161, 1
      %s163 = scalar_select %p160, %s161, %s162
      %p166 = pneg %p160
      %p167 = scmp.eq.s32.totalorder %s14, 3
      %p168 = por %p166, %p167
      %p169 = scmp.ne.s32.totalorder %s161, %s164
      %p170 = scmp.eq.s32.totalorder %s14, 0
      %p171 = por %p169, %p170
      %p172 = scmp.ne.s32.totalorder %s161, %s164
      %p173 = scmp.eq.s32.totalorder %s19, 3
      %p174 = por %p172, %p173
      %p175 = scmp.ne.s32.totalorder %s164, %s165
      %p176 = scmp.eq.s32.totalorder %s19, 0
      %p177 = por %p175, %p176
      %p178 = scmp.ne.s32.totalorder %s164, %s165
      %p179 = scmp.eq.s32.totalorder %s20, 3
      %p180 = por %p178, %p179
      %p182 = scmp.ne.s32.totalorder %s165, %s181
      %p183 = scmp.eq.s32.totalorder %s20, 0
      %p184 = por %p182, %p183
      %p185 = scmp.le.s32.totalorder 1, %s14
      %p186 = scmp.lt.s32.totalorder %s14, 5
      %p187 = pnand %p185, %p186
      %p188 = pneg %p187
      // Predicated region
      $region9: #{feed_forward.1} parent=5 // pred_check
        _
      $region10: #{feed_forward.1} parent=5 // pred_check_branch
        %190 = sbr.rel (%p187) target = $region12
      $region11: #{feed_forward.1} parent=5 // pred_region
        %s191 = ssub.s32 %s14, 1
        // Predicated region
        $region13: #{feed_forward.1} parent=11 // pred_check
          %p192 = pneg %p151
        $region14: #{feed_forward.1} parent=11 // pred_check_branch
          %194 = sbr.rel (%p192) target = $region16
        $region15: #{feed_forward.1} parent=11 // pred_region
          _
        $region16: #{feed_forward.1} parent=11 // pred_fallthru
          _
      $region12: #{feed_forward.1} parent=5 // pred_fallthru
        _
      %p195 = scmp.lt.s32.totalorder %s14, 4
      // Predicated region
      $region17: #{feed_forward.1} parent=5 // pred_check
        %p196 = pneg %p195
      $region18: #{feed_forward.1} parent=5 // pred_check_branch
        %198 = sbr.rel (%p196) target = $region20
      $region19: #{feed_forward.1} parent=5 // pred_region
        // Predicated region
        $region21: #{feed_forward.1} parent=19 // pred_check
          %p199 = pneg %p46
        $region22: #{feed_forward.1} parent=19 // pred_check_branch
          %201 = sbr.rel (%p199) target = $region24
        $region23: #{feed_forward.1} parent=19 // pred_region
          %s202 = smul.u32 32, %s21
          %p203 = scmp.lt.s32.totalorder %s202, 63
          %s204 = scalar_select %p203, %s202, 63
          %s205 = smul.addr %s204, 4
          %s206 = scalar_lea.vmem %s0, %s205
          %s207 = smul.u32 32, %s21
        $region24: #{feed_forward.1} parent=19 // pred_fallthru
          _
        // Predicated region
        $region25: #{feed_forward.1} parent=19 // pred_check
          %p208 = pneg %p72
        $region26: #{feed_forward.1} parent=19 // pred_check_branch
          %210 = sbr.rel (%p208) target = $region28
        $region27: #{feed_forward.1} parent=19 // pred_region
          %s211 = sand.u32 %s62, 1
          %s212 = sand.u32 %s62, 1
          %s213 = smul.addr %s212, 256
          %s214 = scalar_lea.vmem [#allocation3], %s213
          %s215 = smul.u32 4, %s22
          %s216 = smul.addr %s215, 4
          %s217 = scalar_lea.vmem %s1, %s216
          // Predicated region
          $region29: #{feed_forward.1} parent=27 // pred_check
            _
          $region30: #{feed_forward.1} parent=27 // pred_check_branch
            %219 = sbr.rel (0) target = $region32
          $region31: #{feed_forward.1} parent=27 // pred_region
            // Predicated region
            $region33: #{feed_forward.1} parent=31 // pred_check
              _
            $region34: #{feed_forward.1} parent=31 // pred_check_branch
              %221 = sbr.rel (0) target = $region36
            $region35: #{feed_forward.1} parent=31 // pred_region
              loop: start=0, step=1, limit=1
              $region37: #{feed_forward.1} parent=35 // loop_pre_header
                _
              $region38: #{feed_forward.1} parent=35 // loop_header
                %s223 = sphi 0, %s227
                %p224 = scmp.ge.s32.totalorder %s223, 1
                %s228 = sphi %s217, %s217
                %s229 = sphi %s214, %s214
              $region39: #{feed_forward.1} parent=35 // loop_header_branch
                %226 = sbr.rel (%p224) target = $region43
              $region40: #{feed_forward.1} parent=35 // loop_body
                %v230 = vld [vmem:[%s228] sm:$0xff]
                %231 = vst [vmem:[%s229] sm:$0xff] %v230
                %v232 = vld [vmem:[%s228 + $0x8] sm:$0xff]
                %233 = vst [vmem:[%s229 + $0x8] sm:$0xff] %v232
                %v234 = vld [vmem:[%s228 + $0x20] sm:$0xff]
                %235 = vst [vmem:[%s229 + $0x10] sm:$0xff] %v234
                %v236 = vld [vmem:[%s228 + $0x28] sm:$0xff]
                %237 = vst [vmem:[%s229 + $0x18] sm:$0xff] %v236
                %v238 = vld [vmem:[%s228 + $0x40] sm:$0xff]
                %239 = vst [vmem:[%s229 + $0x20] sm:$0xff] %v238
                %v240 = vld [vmem:[%s228 + $0x48] sm:$0xff]
                %241 = vst [vmem:[%s229 + $0x28] sm:$0xff] %v240
                %v242 = vld [vmem:[%s228 + $0x60] sm:$0xff]
                %243 = vst [vmem:[%s229 + $0x30] sm:$0xff] %v242
                %v244 = vld [vmem:[%s228 + $0x68] sm:$0xff]
                %245 = vst [vmem:[%s229 + $0x38] sm:$0xff] %v244
                %v246 = vld [vmem:[%s228 + $0x80] sm:$0xff]
                %247 = vst [vmem:[%s229 + $0x40] sm:$0xff] %v246
                %v248 = vld [vmem:[%s228 + $0x88] sm:$0xff]
                %249 = vst [vmem:[%s229 + $0x48] sm:$0xff] %v248
                %v250 = vld [vmem:[%s228 + $0xa0] sm:$0xff]
                %251 = vst [vmem:[%s229 + $0x50] sm:$0xff] %v250
                %v252 = vld [vmem:[%s228 + $0xa8] sm:$0xff]
                %253 = vst [vmem:[%s229 + $0x58] sm:$0xff] %v252
                %v254 = vld [vmem:[%s228 + $0xc0] sm:$0xff]
                %255 = vst [vmem:[%s229 + $0x60] sm:$0xff] %v254
                %v256 = vld [vmem:[%s228 + $0xc8] sm:$0xff]
                %257 = vst [vmem:[%s229 + $0x68] sm:$0xff] %v256
                %v258 = vld [vmem:[%s228 + $0xe0] sm:$0xff]
                %259 = vst [vmem:[%s229 + $0x70] sm:$0xff] %v258
                %v260 = vld [vmem:[%s228 + $0xe8] sm:$0xff]
                %261 = vst [vmem:[%s229 + $0x78] sm:$0xff] %v260
                %v262 = vld [vmem:[%s228 + $0x100] sm:$0xff]
                %263 = vst [vmem:[%s229 + $0x80] sm:$0xff] %v262
                %v264 = vld [vmem:[%s228 + $0x108] sm:$0xff]
                %265 = vst [vmem:[%s229 + $0x88] sm:$0xff] %v264
                %v266 = vld [vmem:[%s228 + $0x120] sm:$0xff]
                %267 = vst [vmem:[%s229 + $0x90] sm:$0xff] %v266
                %v268 = vld [vmem:[%s228 + $0x128] sm:$0xff]
                %269 = vst [vmem:[%s229 + $0x98] sm:$0xff] %v268
                %v270 = vld [vmem:[%s228 + $0x140] sm:$0xff]
                %271 = vst [vmem:[%s229 + $0xa0] sm:$0xff] %v270
                %v272 = vld [vmem:[%s228 + $0x148] sm:$0xff]
                %273 = vst [vmem:[%s229 + $0xa8] sm:$0xff] %v272
                %v274 = vld [vmem:[%s228 + $0x160] sm:$0xff]
                %275 = vst [vmem:[%s229 + $0xb0] sm:$0xff] %v274
                %v276 = vld [vmem:[%s228 + $0x168] sm:$0xff]
                %277 = vst [vmem:[%s229 + $0xb8] sm:$0xff] %v276
                %v278 = vld [vmem:[%s228 + $0x180] sm:$0xff]
                %279 = vst [vmem:[%s229 + $0xc0] sm:$0xff] %v278
                %v280 = vld [vmem:[%s228 + $0x188] sm:$0xff]
                %281 = vst [vmem:[%s229 + $0xc8] sm:$0xff] %v280
                %v282 = vld [vmem:[%s228 + $0x1a0] sm:$0xff]
                %283 = vst [vmem:[%s229 + $0xd0] sm:$0xff] %v282
                %v284 = vld [vmem:[%s228 + $0x1a8] sm:$0xff]
                %285 = vst [vmem:[%s229 + $0xd8] sm:$0xff] %v284
                %v286 = vld [vmem:[%s228 + $0x1c0] sm:$0xff]
                %287 = vst [vmem:[%s229 + $0xe0] sm:$0xff] %v286
                %v288 = vld [vmem:[%s228 + $0x1c8] sm:$0xff]
                %289 = vst [vmem:[%s229 + $0xe8] sm:$0xff] %v288
                %v290 = vld [vmem:[%s228 + $0x1e0] sm:$0xff]
                %291 = vst [vmem:[%s229 + $0xf0] sm:$0xff] %v290
                %v292 = vld [vmem:[%s228 + $0x1e8] sm:$0xff]
                %293 = vst [vmem:[%s229 + $0xf8] sm:$0xff] %v292
              $region41: #{feed_forward.1} parent=35 // loop_footer
                %s227 = sadd.s32 1, %s223
              $region42: #{feed_forward.1} parent=35 // loop_footer_branch
                %222 = sbr.rel target = $region38
              $region43: #{feed_forward.1} parent=35 // loop_exit
                _
            $region36: #{feed_forward.1} parent=31 // pred_fallthru
              _
            // Predicated region
            $region44: #{feed_forward.1} parent=31 // pred_check
              _
            $region45: #{feed_forward.1} parent=31 // pred_check_branch
              %295 = sbr.rel target = $region47
            $region46: #{feed_forward.1} parent=31 // pred_region
              _
            $region47: #{feed_forward.1} parent=31 // pred_fallthru
              _
          $region32: #{feed_forward.1} parent=27 // pred_fallthru
            _
          %296 = vnop
        $region28: #{feed_forward.1} parent=19 // pred_fallthru
          _
        // Predicated region
        $region48: #{feed_forward.1} parent=19 // pred_check
          %p297 = pneg %p98
        $region49: #{feed_forward.1} parent=19 // pred_check_branch
          %299 = sbr.rel (%p297) target = $region51
        $region50: #{feed_forward.1} parent=19 // pred_region
          %s300 = smul.u32 4, %s22
          %p301 = scmp.lt.s32.totalorder %s300, 7
          %s302 = scalar_select %p301, %s300, 7
          %s303 = scalar_lea.vmem %s2, %s302
          %s304 = smul.u32 4, %s22
        $region51: #{feed_forward.1} parent=19 // pred_fallthru
          _
        // Predicated region
        $region52: #{feed_forward.1} parent=19 // pred_check
          %p305 = pneg %p124
        $region53: #{feed_forward.1} parent=19 // pred_check_branch
          %307 = sbr.rel (%p305) target = $region55
        $region54: #{feed_forward.1} parent=19 // pred_region
          %s308 = smul.u32 64, %s22
          %p309 = scmp.lt.s32.totalorder %s308, 127
          %s310 = scalar_select %p309, %s308, 127
          %s311 = smul.addr %s310, 4
          %s312 = scalar_lea.vmem %s3, %s311
          %s313 = smul.u32 64, %s22
        $region55: #{feed_forward.1} parent=19 // pred_fallthru
          _
      $region20: #{feed_forward.1} parent=5 // pred_fallthru
        _
      %p314 = scmp.le.s32.totalorder 1, %s14
      %p315 = scmp.lt.s32.totalorder %s14, 5
      %p316 = pnand %p314, %p315
      %p317 = pneg %p316
      // Predicated region
      $region56: #{feed_forward.1} parent=5 // pred_check
        _
      $region57: #{feed_forward.1} parent=5 // pred_check_branch
        %319 = sbr.rel (%p316) target = $region59
      $region58: #{feed_forward.1} parent=5 // pred_region
        %s320 = ssub.s32 %s14, 1
        %s321 = sand.u32 %s65, 1
        %s322 = sand.u32 %s65, 1
        %s323 = smul.addr %s322, 256
        %s324 = scalar_lea.vmem [#allocation3], %s323
        // Predicated region
        $region60: #{feed_forward.1} parent=58 // pred_check
          %p325 = pneg %p78
        $region61: #{feed_forward.1} parent=58 // pred_check_branch
          %327 = sbr.rel (%p325) target = $region63
        $region62: #{feed_forward.1} parent=58 // pred_region
          _
        $region63: #{feed_forward.1} parent=58 // pred_fallthru
          _
        %s328 = smul.u32 32, %s23
        %p329 = scmp.lt.s32.totalorder %s328, 63
        %s330 = scalar_select %p329, %s328, 63
        %s331 = smul.addr %s330, 4
        %s332 = scalar_lea.vmem %s0, %s331
        %p333 = pneg %p52
        %p334 = pneg %p49
        %s335 = sand.u32 %s65, 1
        %s336 = sand.u32 %s65, 1
        %s337 = smul.addr %s336, 256
        %s338 = scalar_lea.vmem [#allocation3], %s337
        %p339 = pneg %p78
        %p340 = pneg %p75
        %s341 = smul.u32 4, %s24
        %p342 = scmp.lt.s32.totalorder %s341, 7
        %s343 = scalar_select %p342, %s341, 7
        %s344 = scalar_lea.vmem %s2, %s343
        %p345 = pneg %p104
        %p346 = pneg %p101
        %s347 = smul.u32 64, %s24
        %p348 = scmp.lt.s32.totalorder %s347, 127
        %s349 = scalar_select %p348, %s347, 127
        %s350 = smul.addr %s349, 4
        %s351 = scalar_lea.vmem %s3, %s350
        %p352 = pneg %p130
        %p353 = pneg %p127
        %p354 = pneg %p151
        %p355 = pneg %p148
        %p356 = pneg %p177
        %p357 = pneg %p174
        %s358 = sand.u32 %s164, 1
        %s359 = scalar_lea.sflag [#allocation5], %s358
        %s360 = sand.u32 %s164, 1
        %s361 = smul.addr %s360, 256
        %s362 = scalar_lea.vmem [#allocation4], %s361
        %s363 = smul.u32 32, %s23
        %p364 = scmp.lt.s32.totalorder %s363, 63
        %s365 = scalar_select %p364, %s363, 63
        %s366 = smul.addr %s365, 4
        %s367 = scalar_lea.vmem %s0, %s366
        %s368 = smul.u32 32, %s23
        %s369 = smul.u32 4, %s24
        %s370 = smul.u32 4, %s24
        %p371 = scmp.lt.s32.totalorder %s370, 7
        %s372 = scalar_select %p371, %s370, 7
        %s373 = scalar_lea.vmem %s2, %s372
        %s374 = smul.u32 4, %s24
        %s375 = smul.u32 64, %s24
        %p376 = scmp.lt.s32.totalorder %s375, 127
        %s377 = scalar_select %p376, %s375, 127
        %s378 = smul.addr %s377, 4
        %s379 = scalar_lea.vmem %s3, %s378
        %s380 = smul.u32 64, %s24
        %s381 = smul.u32 32, %s23
        %p383 = scmp.eq.s32.totalorder %s24, 0
        // Predicated region
        $region64: #{feed_forward.1} parent=58 // pred_check
          %p384 = pneg %p383
        $region65: #{feed_forward.1} parent=58 // pred_check_branch
          %386 = sbr.rel (%p384) target = $region67
        $region66: #{feed_forward.1} parent=58 // pred_region
          %387 = vst [vmem:[#allocation2] sm:$0xff] 0.0
          %388 = vst [vmem:[#allocation2 + $0x8] sm:$0xff] 0.0
          %389 = vst [vmem:[#allocation2 + $0x10] sm:$0xff] 0.0
          %390 = vst [vmem:[#allocation2 + $0x18] sm:$0xff] 0.0
          %391 = vst [vmem:[#allocation2 + $0x20] sm:$0xff] 0.0
          %392 = vst [vmem:[#allocation2 + $0x28] sm:$0xff] 0.0
          %393 = vst [vmem:[#allocation2 + $0x30] sm:$0xff] 0.0
          %394 = vst [vmem:[#allocation2 + $0x38] sm:$0xff] 0.0
          %395 = vst [vmem:[#allocation2 + $0x40] sm:$0xff] 0.0
          %396 = vst [vmem:[#allocation2 + $0x48] sm:$0xff] 0.0
          %397 = vst [vmem:[#allocation2 + $0x50] sm:$0xff] 0.0
          %398 = vst [vmem:[#allocation2 + $0x58] sm:$0xff] 0.0
          %399 = vst [vmem:[#allocation2 + $0x60] sm:$0xff] 0.0
          %400 = vst [vmem:[#allocation2 + $0x68] sm:$0xff] 0.0
          %401 = vst [vmem:[#allocation2 + $0x70] sm:$0xff] 0.0
          %402 = vst [vmem:[#allocation2 + $0x78] sm:$0xff] 0.0
          %403 = vst [vmem:[#allocation2 + $0x80] sm:$0xff] 0.0
          %404 = vst [vmem:[#allocation2 + $0x88] sm:$0xff] 0.0
          %405 = vst [vmem:[#allocation2 + $0x90] sm:$0xff] 0.0
          %406 = vst [vmem:[#allocation2 + $0x98] sm:$0xff] 0.0
          %407 = vst [vmem:[#allocation2 + $0xa0] sm:$0xff] 0.0
          %408 = vst [vmem:[#allocation2 + $0xa8] sm:$0xff] 0.0
          %409 = vst [vmem:[#allocation2 + $0xb0] sm:$0xff] 0.0
          %410 = vst [vmem:[#allocation2 + $0xb8] sm:$0xff] 0.0
          %411 = vst [vmem:[#allocation2 + $0xc0] sm:$0xff] 0.0
          %412 = vst [vmem:[#allocation2 + $0xc8] sm:$0xff] 0.0
          %413 = vst [vmem:[#allocation2 + $0xd0] sm:$0xff] 0.0
          %414 = vst [vmem:[#allocation2 + $0xd8] sm:$0xff] 0.0
          %415 = vst [vmem:[#allocation2 + $0xe0] sm:$0xff] 0.0
          %416 = vst [vmem:[#allocation2 + $0xe8] sm:$0xff] 0.0
          %417 = vst [vmem:[#allocation2 + $0xf0] sm:$0xff] 0.0
          %418 = vst [vmem:[#allocation2 + $0xf8] sm:$0xff] 0.0
        $region67: #{feed_forward.1} parent=58 // pred_fallthru
          _
        %v419 = vld [vmem:[%s367] sm:$0xf]
        %v420 = vld [vmem:[%s367 + $0x4] sm:$0xf]
        %v421 = vld [vmem:[%s367 + $0x8] sm:$0xf]
        %v422 = vld [vmem:[%s367 + $0xc] sm:$0xf]
        %v423 = vld [vmem:[%s367 + $0x10] sm:$0xf]
        %v424 = vld [vmem:[%s367 + $0x14] sm:$0xf]
        %v425 = vld [vmem:[%s367 + $0x18] sm:$0xf]
        %v426 = vld [vmem:[%s367 + $0x1c] sm:$0xf]
        %v427 = vld [vmem:[%s367 + $0x20] sm:$0xf]
        %v428 = vld [vmem:[%s367 + $0x24] sm:$0xf]
        %v429 = vld [vmem:[%s367 + $0x28] sm:$0xf]
        %v430 = vld [vmem:[%s367 + $0x2c] sm:$0xf]
        %v431 = vld [vmem:[%s367 + $0x30] sm:$0xf]
        %v432 = vld [vmem:[%s367 + $0x34] sm:$0xf]
        %v433 = vld [vmem:[%s367 + $0x38] sm:$0xf]
        %v434 = vld [vmem:[%s367 + $0x3c] sm:$0xf]
        %v435 = vld [vmem:[%s367 + $0x40] sm:$0xf]
        %v436 = vld [vmem:[%s367 + $0x44] sm:$0xf]
        %v437 = vld [vmem:[%s367 + $0x48] sm:$0xf]
        %v438 = vld [vmem:[%s367 + $0x4c] sm:$0xf]
        %v439 = vld [vmem:[%s367 + $0x50] sm:$0xf]
        %v440 = vld [vmem:[%s367 + $0x54] sm:$0xf]
        %v441 = vld [vmem:[%s367 + $0x58] sm:$0xf]
        %v442 = vld [vmem:[%s367 + $0x5c] sm:$0xf]
        %v443 = vld [vmem:[%s367 + $0x60] sm:$0xf]
        %v444 = vld [vmem:[%s367 + $0x64] sm:$0xf]
        %v445 = vld [vmem:[%s367 + $0x68] sm:$0xf]
        %v446 = vld [vmem:[%s367 + $0x6c] sm:$0xf]
        %v447 = vld [vmem:[%s367 + $0x70] sm:$0xf]
        %v448 = vld [vmem:[%s367 + $0x74] sm:$0xf]
        %v449 = vld [vmem:[%s367 + $0x78] sm:$0xf]
        %v450 = vld [vmem:[%s367 + $0x7c] sm:$0xf]
        %v451 = vld [vmem:[%s324] sm:$0xff]
        %v452 = vld [vmem:[%s324 + $0x8] sm:$0xff]
        %v453 = vld [vmem:[%s324 + $0x10] sm:$0xff]
        %v454 = vld [vmem:[%s324 + $0x18] sm:$0xff]
        %v455 = vld [vmem:[%s324 + $0x20] sm:$0xff]
        %v456 = vld [vmem:[%s324 + $0x28] sm:$0xff]
        %v457 = vld [vmem:[%s324 + $0x30] sm:$0xff]
        %v458 = vld [vmem:[%s324 + $0x38] sm:$0xff]
        %v459 = vld [vmem:[%s324 + $0x40] sm:$0xff]
        %v460 = vld [vmem:[%s324 + $0x48] sm:$0xff]
        %v461 = vld [vmem:[%s324 + $0x50] sm:$0xff]
        %v462 = vld [vmem:[%s324 + $0x58] sm:$0xff]
        %v463 = vld [vmem:[%s324 + $0x60] sm:$0xff]
        %v464 = vld [vmem:[%s324 + $0x68] sm:$0xff]
        %v465 = vld [vmem:[%s324 + $0x70] sm:$0xff]
        %v466 = vld [vmem:[%s324 + $0x78] sm:$0xff]
        %v467 = vld [vmem:[%s324 + $0x80] sm:$0xff]
        %v468 = vld [vmem:[%s324 + $0x88] sm:$0xff]
        %v469 = vld [vmem:[%s324 + $0x90] sm:$0xff]
        %v470 = vld [vmem:[%s324 + $0x98] sm:$0xff]
        %v471 = vld [vmem:[%s324 + $0xa0] sm:$0xff]
        %v472 = vld [vmem:[%s324 + $0xa8] sm:$0xff]
        %v473 = vld [vmem:[%s324 + $0xb0] sm:$0xff]
        %v474 = vld [vmem:[%s324 + $0xb8] sm:$0xff]
        %v475 = vld [vmem:[%s324 + $0xc0] sm:$0xff]
        %v476 = vld [vmem:[%s324 + $0xc8] sm:$0xff]
        %v477 = vld [vmem:[%s324 + $0xd0] sm:$0xff]
        %v478 = vld [vmem:[%s324 + $0xd8] sm:$0xff]
        %v479 = vld [vmem:[%s324 + $0xe0] sm:$0xff]
        %v480 = vld [vmem:[%s324 + $0xe8] sm:$0xff]
        %v481 = vld [vmem:[%s324 + $0xf0] sm:$0xff]
        %v482 = vld [vmem:[%s324 + $0xf8] sm:$0xff]
        %v483 = vld [vmem:[%s373] sm:$0xf]
        %v485 = vlaneseq
        %v486 = vshrl.u32 %v485, 7
        %v487 = vsub.s32 0, %v486
        %v488 = vrot.slane %v483, %v487
        %v489 = vlaneseq
        %v490 = vshrl.u32 %v489, 7
        %v491 = vsub.s32 1, %v490
        %v492 = vrot.slane %v483, %v491
        %v493 = vlaneseq
        %v494 = vshrl.u32 %v493, 7
        %v495 = vsub.s32 2, %v494
        %v496 = vrot.slane %v483, %v495
        %v497 = vlaneseq
        %v498 = vshrl.u32 %v497, 7
        %v499 = vsub.s32 3, %v498
        %v500 = vrot.slane %v483, %v499
        %v537 = vunpack.c.l.b16 %v419
        %v538 = vunpack.c.l.b16 %v420
        %v539 = vunpack.c.l.b16 %v421
        %v540 = vunpack.c.l.b16 %v422
        %v541 = vunpack.c.l.b16 %v423
        %v542 = vunpack.c.l.b16 %v424
        %v543 = vunpack.c.l.b16 %v425
        %v544 = vunpack.c.l.b16 %v426
        %v545 = vunpack.c.l.b16 %v427
        %v546 = vunpack.c.l.b16 %v428
        %v547 = vunpack.c.l.b16 %v429
        %v548 = vunpack.c.l.b16 %v430
        %v549 = vunpack.c.l.b16 %v431
        %v550 = vunpack.c.l.b16 %v432
        %v551 = vunpack.c.l.b16 %v433
        %v552 = vunpack.c.l.b16 %v434
        %v553 = vunpack.c.l.b16 %v435
        %v554 = vunpack.c.l.b16 %v436
        %v555 = vunpack.c.l.b16 %v437
        %v556 = vunpack.c.l.b16 %v438
        %v557 = vunpack.c.l.b16 %v439
        %v558 = vunpack.c.l.b16 %v440
        %v559 = vunpack.c.l.b16 %v441
        %v560 = vunpack.c.l.b16 %v442
        %v561 = vunpack.c.l.b16 %v443
        %v562 = vunpack.c.l.b16 %v444
        %v563 = vunpack.c.l.b16 %v445
        %v564 = vunpack.c.l.b16 %v446
        %v565 = vunpack.c.l.b16 %v447
        %v566 = vunpack.c.l.b16 %v448
        %v567 = vunpack.c.l.b16 %v449
        %v568 = vunpack.c.l.b16 %v450
        %v569 = vpack.c.b16 %v538, %v537
        %v570 = vpack.c.b16 %v540, %v539
        %v571 = vpack.c.b16 %v542, %v541
        %v572 = vpack.c.b16 %v544, %v543
        %v573 = vpack.c.b16 %v546, %v545
        %v574 = vpack.c.b16 %v548, %v547
        %v575 = vpack.c.b16 %v550, %v549
        %v576 = vpack.c.b16 %v552, %v551
        %v577 = vpack.c.b16 %v554, %v553
        %v578 = vpack.c.b16 %v556, %v555
        %v579 = vpack.c.b16 %v558, %v557
        %v580 = vpack.c.b16 %v560, %v559
        %v581 = vpack.c.b16 %v562, %v561
        %v582 = vpack.c.b16 %v564, %v563
        %v583 = vpack.c.b16 %v566, %v565
        %v584 = vpack.c.b16 %v568, %v567
        %v633 = vunpack.c.l.b16 %v451
        %v634 = vunpack.c.h.b16 %v451
        %v635 = vunpack.c.l.b16 %v452
        %v636 = vunpack.c.h.b16 %v452
        %v637 = vunpack.c.l.b16 %v453
        %v638 = vunpack.c.h.b16 %v453
        %v639 = vunpack.c.l.b16 %v454
        %v640 = vunpack.c.h.b16 %v454
        %v641 = vunpack.c.l.b16 %v455
        %v642 = vunpack.c.h.b16 %v455
        %v643 = vunpack.c.l.b16 %v456
        %v644 = vunpack.c.h.b16 %v456
        %v645 = vunpack.c.l.b16 %v457
        %v646 = vunpack.c.h.b16 %v457
        %v647 = vunpack.c.l.b16 %v458
        %v648 = vunpack.c.h.b16 %v458
        %v649 = vunpack.c.l.b16 %v459
        %v650 = vunpack.c.h.b16 %v459
        %v651 = vunpack.c.l.b16 %v460
        %v652 = vunpack.c.h.b16 %v460
        %v653 = vunpack.c.l.b16 %v461
        %v654 = vunpack.c.h.b16 %v461
        %v655 = vunpack.c.l.b16 %v462
        %v656 = vunpack.c.h.b16 %v462
        %v657 = vunpack.c.l.b16 %v463
        %v658 = vunpack.c.h.b16 %v463
        %v659 = vunpack.c.l.b16 %v464
        %v660 = vunpack.c.h.b16 %v464
        %v661 = vunpack.c.l.b16 %v465
        %v662 = vunpack.c.h.b16 %v465
        %v663 = vunpack.c.l.b16 %v466
        %v664 = vunpack.c.h.b16 %v466
        %v665 = vunpack.c.l.b16 %v467
        %v666 = vunpack.c.h.b16 %v467
        %v667 = vunpack.c.l.b16 %v468
        %v668 = vunpack.c.h.b16 %v468
        %v669 = vunpack.c.l.b16 %v469
        %v670 = vunpack.c.h.b16 %v469
        %v671 = vunpack.c.l.b16 %v470
        %v672 = vunpack.c.h.b16 %v470
        %v673 = vunpack.c.l.b16 %v471
        %v674 = vunpack.c.h.b16 %v471
        %v675 = vunpack.c.l.b16 %v472
        %v676 = vunpack.c.h.b16 %v472
        %v677 = vunpack.c.l.b16 %v473
        %v678 = vunpack.c.h.b16 %v473
        %v679 = vunpack.c.l.b16 %v474
        %v680 = vunpack.c.h.b16 %v474
        %v681 = vunpack.c.l.b16 %v475
        %v682 = vunpack.c.h.b16 %v475
        %v683 = vunpack.c.l.b16 %v476
        %v684 = vunpack.c.h.b16 %v476
        %v685 = vunpack.c.l.b16 %v477
        %v686 = vunpack.c.h.b16 %v477
        %v687 = vunpack.c.l.b16 %v478
        %v688 = vunpack.c.h.b16 %v478
        %v689 = vunpack.c.l.b16 %v479
        %v690 = vunpack.c.h.b16 %v479
        %v691 = vunpack.c.l.b16 %v480
        %v692 = vunpack.c.h.b16 %v480
        %v693 = vunpack.c.l.b16 %v481
        %v694 = vunpack.c.h.b16 %v481
        %v695 = vunpack.c.l.b16 %v482
        %v696 = vunpack.c.h.b16 %v482
        %v697 = vpack.c.b16 %v637, %v633
        %v698 = vpack.c.b16 %v638, %v634
        %v699 = vpack.c.b16 %v639, %v635
        %v700 = vpack.c.b16 %v640, %v636
        %v701 = vpack.c.b16 %v645, %v641
        %v702 = vpack.c.b16 %v646, %v642
        %v703 = vpack.c.b16 %v647, %v643
        %v704 = vpack.c.b16 %v648, %v644
        %v705 = vpack.c.b16 %v653, %v649
        %v706 = vpack.c.b16 %v654, %v650
        %v707 = vpack.c.b16 %v655, %v651
        %v708 = vpack.c.b16 %v656, %v652
        %v709 = vpack.c.b16 %v661, %v657
        %v710 = vpack.c.b16 %v662, %v658
        %v711 = vpack.c.b16 %v663, %v659
        %v712 = vpack.c.b16 %v664, %v660
        %v713 = vpack.c.b16 %v669, %v665
        %v714 = vpack.c.b16 %v670, %v666
        %v715 = vpack.c.b16 %v671, %v667
        %v716 = vpack.c.b16 %v672, %v668
        %v717 = vpack.c.b16 %v677, %v673
        %v718 = vpack.c.b16 %v678, %v674
        %v719 = vpack.c.b16 %v679, %v675
        %v720 = vpack.c.b16 %v680, %v676
        %v721 = vpack.c.b16 %v685, %v681
        %v722 = vpack.c.b16 %v686, %v682
        %v723 = vpack.c.b16 %v687, %v683
        %v724 = vpack.c.b16 %v688, %v684
        %v725 = vpack.c.b16 %v693, %v689
        %v726 = vpack.c.b16 %v694, %v690
        %v727 = vpack.c.b16 %v695, %v691
        %v728 = vpack.c.b16 %v696, %v692
        %761 = vmatprep.subr.bf16.mxu0 %v726
        %762 = vmatpush1.bf16.msra.mxu0 %v725
        %763 = vmatprep.subr.bf16.mxu0 %v722
        %764 = vmatpush1.bf16.msra.mxu0 %v721
        %765 = vmatprep.subr.bf16.mxu0 %v718
        %766 = vmatpush1.bf16.msra.mxu0 %v717
        %767 = vmatprep.subr.bf16.mxu0 %v714
        %768 = vmatpush1.bf16.msra.mxu0 %v713
        %769 = vmatprep.subr.bf16.mxu0 %v710
        %770 = vmatpush1.bf16.msra.mxu0 %v709
        %771 = vmatprep.subr.bf16.mxu0 %v706
        %772 = vmatpush1.bf16.msra.mxu0 %v705
        %773 = vmatprep.subr.bf16.mxu0 %v702
        %774 = vmatpush1.bf16.msra.mxu0 %v701
        %775 = vmatprep.subr.bf16.mxu0 %v698
        %776 = vmatpush1.bf16.msra.mxu0 %v697
        %777 = vmatprep.subr.bf16.mxu0 0
        %778 = vmatpush2.bf16.msra.mxu0 0
        %779 = vmatprep.subr.bf16.mxu0 0
        %780 = vmatpush2.bf16.msra.mxu0 0
        %781 = vmatprep.subr.bf16.mxu0 0
        %782 = vmatpush2.bf16.msra.mxu0 0
        %783 = vmatprep.subr.bf16.mxu0 0
        %784 = vmatpush2.bf16.msra.mxu0 0
        %785 = vmatprep.subr.bf16.mxu0 0
        %786 = vmatpush2.bf16.msra.mxu0 0
        %787 = vmatprep.subr.bf16.mxu0 0
        %788 = vmatpush2.bf16.msra.mxu0 0
        %789 = vmatprep.subr.bf16.mxu0 0
        %790 = vmatpush2.bf16.msra.mxu0 0
        %791 = vmatprep.subr.bf16.mxu0 0
        %792 = vmatpush2.bf16.msra.mxu0 0
        %793 = vmatprep.mubr.bf16.mxu0 0
        %794 = vmatmul.mubr.bf16.gmra.mxu0 %v569
        %v795 = vpop.f32.mrf.mxu0
        %v796 = vadd.f32 %v488, %v795
        %v797 = vpop.f32.mrf.mxu0
        %v798 = vadd.f32 %v492, %v797
        %v799 = vpop.f32.mrf.mxu0
        %v800 = vadd.f32 %v488, %v799
        %v801 = vpop.f32.mrf.mxu0
        %v802 = vadd.f32 %v492, %v801
        %803 = vmatprep.mubr.bf16.mxu0 0
        %804 = vmatmul.mubr.bf16.gmra.mxu0 %v570
        %v805 = vpop.f32.mrf.mxu0
        %v806 = vadd.f32 %v488, %v805
        %v807 = vpop.f32.mrf.mxu0
        %v808 = vadd.f32 %v492, %v807
        %v809 = vpop.f32.mrf.mxu0
        %v810 = vadd.f32 %v488, %v809
        %v811 = vpop.f32.mrf.mxu0
        %v812 = vadd.f32 %v492, %v811
        %813 = vmatprep.mubr.bf16.mxu0 0
        %814 = vmatmul.mubr.bf16.gmra.mxu0 %v571
        %v815 = vpop.f32.mrf.mxu0
        %v816 = vadd.f32 %v488, %v815
        %v817 = vpop.f32.mrf.mxu0
        %v818 = vadd.f32 %v492, %v817
        %v819 = vpop.f32.mrf.mxu0
        %v820 = vadd.f32 %v488, %v819
        %v821 = vpop.f32.mrf.mxu0
        %v822 = vadd.f32 %v492, %v821
        %823 = vmatprep.mubr.bf16.mxu0 0
        %824 = vmatmul.mubr.bf16.gmra.mxu0 %v572
        %v825 = vpop.f32.mrf.mxu0
        %v826 = vadd.f32 %v488, %v825
        %v827 = vpop.f32.mrf.mxu0
        %v828 = vadd.f32 %v492, %v827
        %v829 = vpop.f32.mrf.mxu0
        %v830 = vadd.f32 %v488, %v829
        %v831 = vpop.f32.mrf.mxu0
        %v832 = vadd.f32 %v492, %v831
        %833 = vmatprep.mubr.bf16.mxu0 0
        %834 = vmatmul.mubr.bf16.gmra.mxu0 %v573
        %v835 = vpop.f32.mrf.mxu0
        %v836 = vadd.f32 %v488, %v835
        %v837 = vpop.f32.mrf.mxu0
        %v838 = vadd.f32 %v492, %v837
        %v839 = vpop.f32.mrf.mxu0
        %v840 = vadd.f32 %v488, %v839
        %v841 = vpop.f32.mrf.mxu0
        %v842 = vadd.f32 %v492, %v841
        %843 = vmatprep.mubr.bf16.mxu0 0
        %844 = vmatmul.mubr.bf16.gmra.mxu0 %v574
        %v845 = vpop.f32.mrf.mxu0
        %v846 = vadd.f32 %v488, %v845
        %v847 = vpop.f32.mrf.mxu0
        %v848 = vadd.f32 %v492, %v847
        %v849 = vpop.f32.mrf.mxu0
        %v850 = vadd.f32 %v488, %v849
        %v851 = vpop.f32.mrf.mxu0
        %v852 = vadd.f32 %v492, %v851
        %853 = vmatprep.mubr.bf16.mxu0 0
        %854 = vmatmul.mubr.bf16.gmra.mxu0 %v575
        %v855 = vpop.f32.mrf.mxu0
        %v856 = vadd.f32 %v488, %v855
        %v857 = vpop.f32.mrf.mxu0
        %v858 = vadd.f32 %v492, %v857
        %v859 = vpop.f32.mrf.mxu0
        %v860 = vadd.f32 %v488, %v859
        %v861 = vpop.f32.mrf.mxu0
        %v862 = vadd.f32 %v492, %v861
        %863 = vmatprep.mubr.bf16.mxu0 0
        %864 = vmatmul.mubr.bf16.gmra.mxu0 %v576
        %v865 = vpop.f32.mrf.mxu0
        %v866 = vadd.f32 %v488, %v865
        %v867 = vpop.f32.mrf.mxu0
        %v868 = vadd.f32 %v492, %v867
        %v869 = vpop.f32.mrf.mxu0
        %v870 = vadd.f32 %v488, %v869
        %v871 = vpop.f32.mrf.mxu0
        %v872 = vadd.f32 %v492, %v871
        %873 = vmatprep.mubr.bf16.mxu0 0
        %874 = vmatmul.mubr.bf16.gmra.mxu0 %v577
        %v875 = vpop.f32.mrf.mxu0
        %v876 = vadd.f32 %v488, %v875
        %v877 = vpop.f32.mrf.mxu0
        %v878 = vadd.f32 %v492, %v877
        %v879 = vpop.f32.mrf.mxu0
        %v880 = vadd.f32 %v488, %v879
        %v881 = vpop.f32.mrf.mxu0
        %v882 = vadd.f32 %v492, %v881
        %883 = vmatprep.mubr.bf16.mxu0 0
        %884 = vmatmul.mubr.bf16.gmra.mxu0 %v578
        %v885 = vpop.f32.mrf.mxu0
        %v886 = vadd.f32 %v488, %v885
        %v887 = vpop.f32.mrf.mxu0
        %v888 = vadd.f32 %v492, %v887
        %v889 = vpop.f32.mrf.mxu0
        %v890 = vadd.f32 %v488, %v889
        %v891 = vpop.f32.mrf.mxu0
        %v892 = vadd.f32 %v492, %v891
        %893 = vmatprep.mubr.bf16.mxu0 0
        %894 = vmatmul.mubr.bf16.gmra.mxu0 %v579
        %v895 = vpop.f32.mrf.mxu0
        %v896 = vadd.f32 %v488, %v895
        %v897 = vpop.f32.mrf.mxu0
        %v898 = vadd.f32 %v492, %v897
        %v899 = vpop.f32.mrf.mxu0
        %v900 = vadd.f32 %v488, %v899
        %v901 = vpop.f32.mrf.mxu0
        %v902 = vadd.f32 %v492, %v901
        %903 = vmatprep.mubr.bf16.mxu0 0
        %904 = vmatmul.mubr.bf16.gmra.mxu0 %v580
        %v905 = vpop.f32.mrf.mxu0
        %v906 = vadd.f32 %v488, %v905
        %v907 = vpop.f32.mrf.mxu0
        %v908 = vadd.f32 %v492, %v907
        %v909 = vpop.f32.mrf.mxu0
        %v910 = vadd.f32 %v488, %v909
        %v911 = vpop.f32.mrf.mxu0
        %v912 = vadd.f32 %v492, %v911
        %913 = vmatprep.mubr.bf16.mxu0 0
        %914 = vmatmul.mubr.bf16.gmra.mxu0 %v581
        %v915 = vpop.f32.mrf.mxu0
        %v916 = vadd.f32 %v488, %v915
        %v917 = vpop.f32.mrf.mxu0
        %v918 = vadd.f32 %v492, %v917
        %v919 = vpop.f32.mrf.mxu0
        %v920 = vadd.f32 %v488, %v919
        %v921 = vpop.f32.mrf.mxu0
        %v922 = vadd.f32 %v492, %v921
        %923 = vmatprep.mubr.bf16.mxu0 0
        %924 = vmatmul.mubr.bf16.gmra.mxu0 %v582
        %v925 = vpop.f32.mrf.mxu0
        %v926 = vadd.f32 %v488, %v925
        %v927 = vpop.f32.mrf.mxu0
        %v928 = vadd.f32 %v492, %v927
        %v929 = vpop.f32.mrf.mxu0
        %v930 = vadd.f32 %v488, %v929
        %v931 = vpop.f32.mrf.mxu0
        %v932 = vadd.f32 %v492, %v931
        %933 = vmatprep.mubr.bf16.mxu0 0
        %934 = vmatmul.mubr.bf16.gmra.mxu0 %v583
        %v935 = vpop.f32.mrf.mxu0
        %v936 = vadd.f32 %v488, %v935
        %v937 = vpop.f32.mrf.mxu0
        %v938 = vadd.f32 %v492, %v937
        %v939 = vpop.f32.mrf.mxu0
        %v940 = vadd.f32 %v488, %v939
        %v941 = vpop.f32.mrf.mxu0
        %v942 = vadd.f32 %v492, %v941
        %943 = vmatprep.mubr.bf16.mxu0 0
        %944 = vmatmul.mubr.bf16.gmra.mxu0 %v584
        %v945 = vpop.f32.mrf.mxu0
        %v946 = vadd.f32 %v488, %v945
        %v947 = vpop.f32.mrf.mxu0
        %v948 = vadd.f32 %v492, %v947
        %v949 = vpop.f32.mrf.mxu0
        %v950 = vadd.f32 %v488, %v949
        %v951 = vpop.f32.mrf.mxu0
        %v952 = vadd.f32 %v492, %v951
        %953 = vdwg.mxu0
        %954 = vmatprep.subr.bf16.mxu0 %v728
        %955 = vmatpush1.bf16.msra.mxu0 %v727
        %956 = vmatprep.subr.bf16.mxu0 %v724
        %957 = vmatpush1.bf16.msra.mxu0 %v723
        %958 = vmatprep.subr.bf16.mxu0 %v720
        %959 = vmatpush1.bf16.msra.mxu0 %v719
        %960 = vmatprep.subr.bf16.mxu0 %v716
        %961 = vmatpush1.bf16.msra.mxu0 %v715
        %962 = vmatprep.subr.bf16.mxu0 %v712
        %963 = vmatpush1.bf16.msra.mxu0 %v711
        %964 = vmatprep.subr.bf16.mxu0 %v708
        %965 = vmatpush1.bf16.msra.mxu0 %v707
        %966 = vmatprep.subr.bf16.mxu0 %v704
        %967 = vmatpush1.bf16.msra.mxu0 %v703
        %968 = vmatprep.subr.bf16.mxu0 %v700
        %969 = vmatpush1.bf16.msra.mxu0 %v699
        %970 = vmatprep.subr.bf16.mxu0 0
        %971 = vmatpush2.bf16.msra.mxu0 0
        %972 = vmatprep.subr.bf16.mxu0 0
        %973 = vmatpush2.bf16.msra.mxu0 0
        %974 = vmatprep.subr.bf16.mxu0 0
        %975 = vmatpush2.bf16.msra.mxu0 0
        %976 = vmatprep.subr.bf16.mxu0 0
        %977 = vmatpush2.bf16.msra.mxu0 0
        %978 = vmatprep.subr.bf16.mxu0 0
        %979 = vmatpush2.bf16.msra.mxu0 0
        %980 = vmatprep.subr.bf16.mxu0 0
        %981 = vmatpush2.bf16.msra.mxu0 0
        %982 = vmatprep.subr.bf16.mxu0 0
        %983 = vmatpush2.bf16.msra.mxu0 0
        %984 = vmatprep.subr.bf16.mxu0 0
        %985 = vmatpush2.bf16.msra.mxu0 0
        %986 = vmatprep.mubr.bf16.mxu0 0
        %987 = vmatmul.mubr.bf16.gmra.mxu0 %v569
        %v988 = vpop.f32.mrf.mxu0
        %v989 = vadd.f32 %v496, %v988
        %v990 = vpop.f32.mrf.mxu0
        %v991 = vadd.f32 %v500, %v990
        %v992 = vpop.f32.mrf.mxu0
        %v993 = vadd.f32 %v496, %v992
        %v994 = vpop.f32.mrf.mxu0
        %v995 = vadd.f32 %v500, %v994
        %996 = vmatprep.mubr.bf16.mxu0 0
        %997 = vmatmul.mubr.bf16.gmra.mxu0 %v570
        %v998 = vpop.f32.mrf.mxu0
        %v999 = vadd.f32 %v496, %v998
        %v1000 = vpop.f32.mrf.mxu0
        %v1001 = vadd.f32 %v500, %v1000
        %v1002 = vpop.f32.mrf.mxu0
        %v1003 = vadd.f32 %v496, %v1002
        %v1004 = vpop.f32.mrf.mxu0
        %v1005 = vadd.f32 %v500, %v1004
        %1006 = vmatprep.mubr.bf16.mxu0 0
        %1007 = vmatmul.mubr.bf16.gmra.mxu0 %v571
        %v1008 = vpop.f32.mrf.mxu0
        %v1009 = vadd.f32 %v496, %v1008
        %v1010 = vpop.f32.mrf.mxu0
        %v1011 = vadd.f32 %v500, %v1010
        %v1012 = vpop.f32.mrf.mxu0
        %v1013 = vadd.f32 %v496, %v1012
        %v1014 = vpop.f32.mrf.mxu0
        %v1015 = vadd.f32 %v500, %v1014
        %1016 = vmatprep.mubr.bf16.mxu0 0
        %1017 = vmatmul.mubr.bf16.gmra.mxu0 %v572
        %v1018 = vpop.f32.mrf.mxu0
        %v1019 = vadd.f32 %v496, %v1018
        %v1020 = vpop.f32.mrf.mxu0
        %v1021 = vadd.f32 %v500, %v1020
        %v1022 = vpop.f32.mrf.mxu0
        %v1023 = vadd.f32 %v496, %v1022
        %v1024 = vpop.f32.mrf.mxu0
        %v1025 = vadd.f32 %v500, %v1024
        %1026 = vmatprep.mubr.bf16.mxu0 0
        %1027 = vmatmul.mubr.bf16.gmra.mxu0 %v573
        %v1028 = vpop.f32.mrf.mxu0
        %v1029 = vadd.f32 %v496, %v1028
        %v1030 = vpop.f32.mrf.mxu0
        %v1031 = vadd.f32 %v500, %v1030
        %v1032 = vpop.f32.mrf.mxu0
        %v1033 = vadd.f32 %v496, %v1032
        %v1034 = vpop.f32.mrf.mxu0
        %v1035 = vadd.f32 %v500, %v1034
        %1036 = vmatprep.mubr.bf16.mxu0 0
        %1037 = vmatmul.mubr.bf16.gmra.mxu0 %v574
        %v1038 = vpop.f32.mrf.mxu0
        %v1039 = vadd.f32 %v496, %v1038
        %v1040 = vpop.f32.mrf.mxu0
        %v1041 = vadd.f32 %v500, %v1040
        %v1042 = vpop.f32.mrf.mxu0
        %v1043 = vadd.f32 %v496, %v1042
        %v1044 = vpop.f32.mrf.mxu0
        %v1045 = vadd.f32 %v500, %v1044
        %1046 = vmatprep.mubr.bf16.mxu0 0
        %1047 = vmatmul.mubr.bf16.gmra.mxu0 %v575
        %v1048 = vpop.f32.mrf.mxu0
        %v1049 = vadd.f32 %v496, %v1048
        %v1050 = vpop.f32.mrf.mxu0
        %v1051 = vadd.f32 %v500, %v1050
        %v1052 = vpop.f32.mrf.mxu0
        %v1053 = vadd.f32 %v496, %v1052
        %v1054 = vpop.f32.mrf.mxu0
        %v1055 = vadd.f32 %v500, %v1054
        %1056 = vmatprep.mubr.bf16.mxu0 0
        %1057 = vmatmul.mubr.bf16.gmra.mxu0 %v576
        %v1058 = vpop.f32.mrf.mxu0
        %v1059 = vadd.f32 %v496, %v1058
        %v1060 = vpop.f32.mrf.mxu0
        %v1061 = vadd.f32 %v500, %v1060
        %v1062 = vpop.f32.mrf.mxu0
        %v1063 = vadd.f32 %v496, %v1062
        %v1064 = vpop.f32.mrf.mxu0
        %v1065 = vadd.f32 %v500, %v1064
        %1066 = vmatprep.mubr.bf16.mxu0 0
        %1067 = vmatmul.mubr.bf16.gmra.mxu0 %v577
        %v1068 = vpop.f32.mrf.mxu0
        %v1069 = vadd.f32 %v496, %v1068
        %v1070 = vpop.f32.mrf.mxu0
        %v1071 = vadd.f32 %v500, %v1070
        %v1072 = vpop.f32.mrf.mxu0
        %v1073 = vadd.f32 %v496, %v1072
        %v1074 = vpop.f32.mrf.mxu0
        %v1075 = vadd.f32 %v500, %v1074
        %1076 = vmatprep.mubr.bf16.mxu0 0
        %1077 = vmatmul.mubr.bf16.gmra.mxu0 %v578
        %v1078 = vpop.f32.mrf.mxu0
        %v1079 = vadd.f32 %v496, %v1078
        %v1080 = vpop.f32.mrf.mxu0
        %v1081 = vadd.f32 %v500, %v1080
        %v1082 = vpop.f32.mrf.mxu0
        %v1083 = vadd.f32 %v496, %v1082
        %v1084 = vpop.f32.mrf.mxu0
        %v1085 = vadd.f32 %v500, %v1084
        %1086 = vmatprep.mubr.bf16.mxu0 0
        %1087 = vmatmul.mubr.bf16.gmra.mxu0 %v579
        %v1088 = vpop.f32.mrf.mxu0
        %v1089 = vadd.f32 %v496, %v1088
        %v1090 = vpop.f32.mrf.mxu0
        %v1091 = vadd.f32 %v500, %v1090
        %v1092 = vpop.f32.mrf.mxu0
        %v1093 = vadd.f32 %v496, %v1092
        %v1094 = vpop.f32.mrf.mxu0
        %v1095 = vadd.f32 %v500, %v1094
        %1096 = vmatprep.mubr.bf16.mxu0 0
        %1097 = vmatmul.mubr.bf16.gmra.mxu0 %v580
        %v1098 = vpop.f32.mrf.mxu0
        %v1099 = vadd.f32 %v496, %v1098
        %v1100 = vpop.f32.mrf.mxu0
        %v1101 = vadd.f32 %v500, %v1100
        %v1102 = vpop.f32.mrf.mxu0
        %v1103 = vadd.f32 %v496, %v1102
        %v1104 = vpop.f32.mrf.mxu0
        %v1105 = vadd.f32 %v500, %v1104
        %1106 = vmatprep.mubr.bf16.mxu0 0
        %1107 = vmatmul.mubr.bf16.gmra.mxu0 %v581
        %v1108 = vpop.f32.mrf.mxu0
        %v1109 = vadd.f32 %v496, %v1108
        %v1110 = vpop.f32.mrf.mxu0
        %v1111 = vadd.f32 %v500, %v1110
        %v1112 = vpop.f32.mrf.mxu0
        %v1113 = vadd.f32 %v496, %v1112
        %v1114 = vpop.f32.mrf.mxu0
        %v1115 = vadd.f32 %v500, %v1114
        %1116 = vmatprep.mubr.bf16.mxu0 0
        %1117 = vmatmul.mubr.bf16.gmra.mxu0 %v582
        %v1118 = vpop.f32.mrf.mxu0
        %v1119 = vadd.f32 %v496, %v1118
        %v1120 = vpop.f32.mrf.mxu0
        %v1121 = vadd.f32 %v500, %v1120
        %v1122 = vpop.f32.mrf.mxu0
        %v1123 = vadd.f32 %v496, %v1122
        %v1124 = vpop.f32.mrf.mxu0
        %v1125 = vadd.f32 %v500, %v1124
        %1126 = vmatprep.mubr.bf16.mxu0 0
        %1127 = vmatmul.mubr.bf16.gmra.mxu0 %v583
        %v1128 = vpop.f32.mrf.mxu0
        %v1129 = vadd.f32 %v496, %v1128
        %v1130 = vpop.f32.mrf.mxu0
        %v1131 = vadd.f32 %v500, %v1130
        %v1132 = vpop.f32.mrf.mxu0
        %v1133 = vadd.f32 %v496, %v1132
        %v1134 = vpop.f32.mrf.mxu0
        %v1135 = vadd.f32 %v500, %v1134
        %1136 = vmatprep.mubr.bf16.mxu0 0
        %1137 = vmatmul.mubr.bf16.gmra.mxu0 %v584
        %v1138 = vpop.f32.mrf.mxu0
        %v1139 = vadd.f32 %v496, %v1138
        %v1140 = vpop.f32.mrf.mxu0
        %v1141 = vadd.f32 %v500, %v1140
        %v1142 = vpop.f32.mrf.mxu0
        %v1143 = vadd.f32 %v496, %v1142
        %v1144 = vpop.f32.mrf.mxu0
        %v1145 = vadd.f32 %v500, %v1144
        %1146 = vdwg.mxu0
        %v1147 = vmax.f32 %v796, 0.0
        %v1148 = vmax.f32 %v798, 0.0
        %v1149 = vmax.f32 %v989, 0.0
        %v1150 = vmax.f32 %v991, 0.0
        %v1151 = vmax.f32 %v800, 0.0
        %v1152 = vmax.f32 %v802, 0.0
        %v1153 = vmax.f32 %v993, 0.0
        %v1154 = vmax.f32 %v995, 0.0
        %v1155 = vmax.f32 %v806, 0.0
        %v1156 = vmax.f32 %v808, 0.0
        %v1157 = vmax.f32 %v999, 0.0
        %v1158 = vmax.f32 %v1001, 0.0
        %v1159 = vmax.f32 %v810, 0.0
        %v1160 = vmax.f32 %v812, 0.0
        %v1161 = vmax.f32 %v1003, 0.0
        %v1162 = vmax.f32 %v1005, 0.0
        %v1163 = vmax.f32 %v816, 0.0
        %v1164 = vmax.f32 %v818, 0.0
        %v1165 = vmax.f32 %v1009, 0.0
        %v1166 = vmax.f32 %v1011, 0.0
        %v1167 = vmax.f32 %v820, 0.0
        %v1168 = vmax.f32 %v822, 0.0
        %v1169 = vmax.f32 %v1013, 0.0
        %v1170 = vmax.f32 %v1015, 0.0
        %v1171 = vmax.f32 %v826, 0.0
        %v1172 = vmax.f32 %v828, 0.0
        %v1173 = vmax.f32 %v1019, 0.0
        %v1174 = vmax.f32 %v1021, 0.0
        %v1175 = vmax.f32 %v830, 0.0
        %v1176 = vmax.f32 %v832, 0.0
        %v1177 = vmax.f32 %v1023, 0.0
        %v1178 = vmax.f32 %v1025, 0.0
        %v1179 = vmax.f32 %v836, 0.0
        %v1180 = vmax.f32 %v838, 0.0
        %v1181 = vmax.f32 %v1029, 0.0
        %v1182 = vmax.f32 %v1031, 0.0
        %v1183 = vmax.f32 %v840, 0.0
        %v1184 = vmax.f32 %v842, 0.0
        %v1185 = vmax.f32 %v1033, 0.0
        %v1186 = vmax.f32 %v1035, 0.0
        %v1187 = vmax.f32 %v846, 0.0
        %v1188 = vmax.f32 %v848, 0.0
        %v1189 = vmax.f32 %v1039, 0.0
        %v1190 = vmax.f32 %v1041, 0.0
        %v1191 = vmax.f32 %v850, 0.0
        %v1192 = vmax.f32 %v852, 0.0
        %v1193 = vmax.f32 %v1043, 0.0
        %v1194 = vmax.f32 %v1045, 0.0
        %v1195 = vmax.f32 %v856, 0.0
        %v1196 = vmax.f32 %v858, 0.0
        %v1197 = vmax.f32 %v1049, 0.0
        %v1198 = vmax.f32 %v1051, 0.0
        %v1199 = vmax.f32 %v860, 0.0
        %v1200 = vmax.f32 %v862, 0.0
        %v1201 = vmax.f32 %v1053, 0.0
        %v1202 = vmax.f32 %v1055, 0.0
        %v1203 = vmax.f32 %v866, 0.0
        %v1204 = vmax.f32 %v868, 0.0
        %v1205 = vmax.f32 %v1059, 0.0
        %v1206 = vmax.f32 %v1061, 0.0
        %v1207 = vmax.f32 %v870, 0.0
        %v1208 = vmax.f32 %v872, 0.0
        %v1209 = vmax.f32 %v1063, 0.0
        %v1210 = vmax.f32 %v1065, 0.0
        %v1211 = vmax.f32 %v876, 0.0
        %v1212 = vmax.f32 %v878, 0.0
        %v1213 = vmax.f32 %v1069, 0.0
        %v1214 = vmax.f32 %v1071, 0.0
        %v1215 = vmax.f32 %v880, 0.0
        %v1216 = vmax.f32 %v882, 0.0
        %v1217 = vmax.f32 %v1073, 0.0
        %v1218 = vmax.f32 %v1075, 0.0
        %v1219 = vmax.f32 %v886, 0.0
        %v1220 = vmax.f32 %v888, 0.0
        %v1221 = vmax.f32 %v1079, 0.0
        %v1222 = vmax.f32 %v1081, 0.0
        %v1223 = vmax.f32 %v890, 0.0
        %v1224 = vmax.f32 %v892, 0.0
        %v1225 = vmax.f32 %v1083, 0.0
        %v1226 = vmax.f32 %v1085, 0.0
        %v1227 = vmax.f32 %v896, 0.0
        %v1228 = vmax.f32 %v898, 0.0
        %v1229 = vmax.f32 %v1089, 0.0
        %v1230 = vmax.f32 %v1091, 0.0
        %v1231 = vmax.f32 %v900, 0.0
        %v1232 = vmax.f32 %v902, 0.0
        %v1233 = vmax.f32 %v1093, 0.0
        %v1234 = vmax.f32 %v1095, 0.0
        %v1235 = vmax.f32 %v906, 0.0
        %v1236 = vmax.f32 %v908, 0.0
        %v1237 = vmax.f32 %v1099, 0.0
        %v1238 = vmax.f32 %v1101, 0.0
        %v1239 = vmax.f32 %v910, 0.0
        %v1240 = vmax.f32 %v912, 0.0
        %v1241 = vmax.f32 %v1103, 0.0
        %v1242 = vmax.f32 %v1105, 0.0
        %v1243 = vmax.f32 %v916, 0.0
        %v1244 = vmax.f32 %v918, 0.0
        %v1245 = vmax.f32 %v1109, 0.0
        %v1246 = vmax.f32 %v1111, 0.0
        %v1247 = vmax.f32 %v920, 0.0
        %v1248 = vmax.f32 %v922, 0.0
        %v1249 = vmax.f32 %v1113, 0.0
        %v1250 = vmax.f32 %v1115, 0.0
        %v1251 = vmax.f32 %v926, 0.0
        %v1252 = vmax.f32 %v928, 0.0
        %v1253 = vmax.f32 %v1119, 0.0
        %v1254 = vmax.f32 %v1121, 0.0
        %v1255 = vmax.f32 %v930, 0.0
        %v1256 = vmax.f32 %v932, 0.0
        %v1257 = vmax.f32 %v1123, 0.0
        %v1258 = vmax.f32 %v1125, 0.0
        %v1259 = vmax.f32 %v936, 0.0
        %v1260 = vmax.f32 %v938, 0.0
        %v1261 = vmax.f32 %v1129, 0.0
        %v1262 = vmax.f32 %v1131, 0.0
        %v1263 = vmax.f32 %v940, 0.0
        %v1264 = vmax.f32 %v942, 0.0
        %v1265 = vmax.f32 %v1133, 0.0
        %v1266 = vmax.f32 %v1135, 0.0
        %v1267 = vmax.f32 %v946, 0.0
        %v1268 = vmax.f32 %v948, 0.0
        %v1269 = vmax.f32 %v1139, 0.0
        %v1270 = vmax.f32 %v1141, 0.0
        %v1271 = vmax.f32 %v950, 0.0
        %v1272 = vmax.f32 %v952, 0.0
        %v1273 = vmax.f32 %v1143, 0.0
        %v1274 = vmax.f32 %v1145, 0.0
        %v1275 = vld [vmem:[#allocation2] sm:$0xff]
        %v1276 = vld [vmem:[#allocation2 + $0x8] sm:$0xff]
        %v1277 = vld [vmem:[#allocation2 + $0x10] sm:$0xff]
        %v1278 = vld [vmem:[#allocation2 + $0x18] sm:$0xff]
        %v1279 = vld [vmem:[#allocation2 + $0x20] sm:$0xff]
        %v1280 = vld [vmem:[#allocation2 + $0x28] sm:$0xff]
        %v1281 = vld [vmem:[#allocation2 + $0x30] sm:$0xff]
        %v1282 = vld [vmem:[#allocation2 + $0x38] sm:$0xff]
        %v1283 = vld [vmem:[#allocation2 + $0x40] sm:$0xff]
        %v1284 = vld [vmem:[#allocation2 + $0x48] sm:$0xff]
        %v1285 = vld [vmem:[#allocation2 + $0x50] sm:$0xff]
        %v1286 = vld [vmem:[#allocation2 + $0x58] sm:$0xff]
        %v1287 = vld [vmem:[#allocation2 + $0x60] sm:$0xff]
        %v1288 = vld [vmem:[#allocation2 + $0x68] sm:$0xff]
        %v1289 = vld [vmem:[#allocation2 + $0x70] sm:$0xff]
        %v1290 = vld [vmem:[#allocation2 + $0x78] sm:$0xff]
        %v1291 = vld [vmem:[#allocation2 + $0x80] sm:$0xff]
        %v1292 = vld [vmem:[#allocation2 + $0x88] sm:$0xff]
        %v1293 = vld [vmem:[#allocation2 + $0x90] sm:$0xff]
        %v1294 = vld [vmem:[#allocation2 + $0x98] sm:$0xff]
        %v1295 = vld [vmem:[#allocation2 + $0xa0] sm:$0xff]
        %v1296 = vld [vmem:[#allocation2 + $0xa8] sm:$0xff]
        %v1297 = vld [vmem:[#allocation2 + $0xb0] sm:$0xff]
        %v1298 = vld [vmem:[#allocation2 + $0xb8] sm:$0xff]
        %v1299 = vld [vmem:[#allocation2 + $0xc0] sm:$0xff]
        %v1300 = vld [vmem:[#allocation2 + $0xc8] sm:$0xff]
        %v1301 = vld [vmem:[#allocation2 + $0xd0] sm:$0xff]
        %v1302 = vld [vmem:[#allocation2 + $0xd8] sm:$0xff]
        %v1303 = vld [vmem:[#allocation2 + $0xe0] sm:$0xff]
        %v1304 = vld [vmem:[#allocation2 + $0xe8] sm:$0xff]
        %v1305 = vld [vmem:[#allocation2 + $0xf0] sm:$0xff]
        %v1306 = vld [vmem:[#allocation2 + $0xf8] sm:$0xff]
        %v1307 = vpack.c.bf16 %v1151, %v1147
        %v1308 = vpack.c.bf16 %v1152, %v1148
        %v1309 = vpack.c.bf16 %v1153, %v1149
        %v1310 = vpack.c.bf16 %v1154, %v1150
        %v1311 = vpack.c.bf16 %v1159, %v1155
        %v1312 = vpack.c.bf16 %v1160, %v1156
        %v1313 = vpack.c.bf16 %v1161, %v1157
        %v1314 = vpack.c.bf16 %v1162, %v1158
        %v1315 = vpack.c.bf16 %v1167, %v1163
        %v1316 = vpack.c.bf16 %v1168, %v1164
        %v1317 = vpack.c.bf16 %v1169, %v1165
        %v1318 = vpack.c.bf16 %v1170, %v1166
        %v1319 = vpack.c.bf16 %v1175, %v1171
        %v1320 = vpack.c.bf16 %v1176, %v1172
        %v1321 = vpack.c.bf16 %v1177, %v1173
        %v1322 = vpack.c.bf16 %v1178, %v1174
        %v1323 = vpack.c.bf16 %v1183, %v1179
        %v1324 = vpack.c.bf16 %v1184, %v1180
        %v1325 = vpack.c.bf16 %v1185, %v1181
        %v1326 = vpack.c.bf16 %v1186, %v1182
        %v1327 = vpack.c.bf16 %v1191, %v1187
        %v1328 = vpack.c.bf16 %v1192, %v1188
        %v1329 = vpack.c.bf16 %v1193, %v1189
        %v1330 = vpack.c.bf16 %v1194, %v1190
        %v1331 = vpack.c.bf16 %v1199, %v1195
        %v1332 = vpack.c.bf16 %v1200, %v1196
        %v1333 = vpack.c.bf16 %v1201, %v1197
        %v1334 = vpack.c.bf16 %v1202, %v1198
        %v1335 = vpack.c.bf16 %v1207, %v1203
        %v1336 = vpack.c.bf16 %v1208, %v1204
        %v1337 = vpack.c.bf16 %v1209, %v1205
        %v1338 = vpack.c.bf16 %v1210, %v1206
        %v1339 = vpack.c.bf16 %v1215, %v1211
        %v1340 = vpack.c.bf16 %v1216, %v1212
        %v1341 = vpack.c.bf16 %v1217, %v1213
        %v1342 = vpack.c.bf16 %v1218, %v1214
        %v1343 = vpack.c.bf16 %v1223, %v1219
        %v1344 = vpack.c.bf16 %v1224, %v1220
        %v1345 = vpack.c.bf16 %v1225, %v1221
        %v1346 = vpack.c.bf16 %v1226, %v1222
        %v1347 = vpack.c.bf16 %v1231, %v1227
        %v1348 = vpack.c.bf16 %v1232, %v1228
        %v1349 = vpack.c.bf16 %v1233, %v1229
        %v1350 = vpack.c.bf16 %v1234, %v1230
        %v1351 = vpack.c.bf16 %v1239, %v1235
        %v1352 = vpack.c.bf16 %v1240, %v1236
        %v1353 = vpack.c.bf16 %v1241, %v1237
        %v1354 = vpack.c.bf16 %v1242, %v1238
        %v1355 = vpack.c.bf16 %v1247, %v1243
        %v1356 = vpack.c.bf16 %v1248, %v1244
        %v1357 = vpack.c.bf16 %v1249, %v1245
        %v1358 = vpack.c.bf16 %v1250, %v1246
        %v1359 = vpack.c.bf16 %v1255, %v1251
        %v1360 = vpack.c.bf16 %v1256, %v1252
        %v1361 = vpack.c.bf16 %v1257, %v1253
        %v1362 = vpack.c.bf16 %v1258, %v1254
        %v1363 = vpack.c.bf16 %v1263, %v1259
        %v1364 = vpack.c.bf16 %v1264, %v1260
        %v1365 = vpack.c.bf16 %v1265, %v1261
        %v1366 = vpack.c.bf16 %v1266, %v1262
        %v1367 = vpack.c.bf16 %v1271, %v1267
        %v1368 = vpack.c.bf16 %v1272, %v1268
        %v1369 = vpack.c.bf16 %v1273, %v1269
        %v1370 = vpack.c.bf16 %v1274, %v1270
        %v1371 = vld [vmem:[%s379] sm:$0xf]
        %v1372 = vld [vmem:[%s379 + $0x4] sm:$0xf]
        %v1373 = vld [vmem:[%s379 + $0x8] sm:$0xf]
        %v1374 = vld [vmem:[%s379 + $0xc] sm:$0xf]
        %v1375 = vld [vmem:[%s379 + $0x10] sm:$0xf]
        %v1376 = vld [vmem:[%s379 + $0x14] sm:$0xf]
        %v1377 = vld [vmem:[%s379 + $0x18] sm:$0xf]
        %v1378 = vld [vmem:[%s379 + $0x1c] sm:$0xf]
        %v1379 = vld [vmem:[%s379 + $0x20] sm:$0xf]
        %v1380 = vld [vmem:[%s379 + $0x24] sm:$0xf]
        %v1381 = vld [vmem:[%s379 + $0x28] sm:$0xf]
        %v1382 = vld [vmem:[%s379 + $0x2c] sm:$0xf]
        %v1383 = vld [vmem:[%s379 + $0x30] sm:$0xf]
        %v1384 = vld [vmem:[%s379 + $0x34] sm:$0xf]
        %v1385 = vld [vmem:[%s379 + $0x38] sm:$0xf]
        %v1386 = vld [vmem:[%s379 + $0x3c] sm:$0xf]
        %v1387 = vld [vmem:[%s379 + $0x40] sm:$0xf]
        %v1388 = vld [vmem:[%s379 + $0x44] sm:$0xf]
        %v1389 = vld [vmem:[%s379 + $0x48] sm:$0xf]
        %v1390 = vld [vmem:[%s379 + $0x4c] sm:$0xf]
        %v1391 = vld [vmem:[%s379 + $0x50] sm:$0xf]
        %v1392 = vld [vmem:[%s379 + $0x54] sm:$0xf]
        %v1393 = vld [vmem:[%s379 + $0x58] sm:$0xf]
        %v1394 = vld [vmem:[%s379 + $0x5c] sm:$0xf]
        %v1395 = vld [vmem:[%s379 + $0x60] sm:$0xf]
        %v1396 = vld [vmem:[%s379 + $0x64] sm:$0xf]
        %v1397 = vld [vmem:[%s379 + $0x68] sm:$0xf]
        %v1398 = vld [vmem:[%s379 + $0x6c] sm:$0xf]
        %v1399 = vld [vmem:[%s379 + $0x70] sm:$0xf]
        %v1400 = vld [vmem:[%s379 + $0x74] sm:$0xf]
        %v1401 = vld [vmem:[%s379 + $0x78] sm:$0xf]
        %v1402 = vld [vmem:[%s379 + $0x7c] sm:$0xf]
        %v1403 = vld [vmem:[%s379 + $0x80] sm:$0xf]
        %v1404 = vld [vmem:[%s379 + $0x84] sm:$0xf]
        %v1405 = vld [vmem:[%s379 + $0x88] sm:$0xf]
        %v1406 = vld [vmem:[%s379 + $0x8c] sm:$0xf]
        %v1407 = vld [vmem:[%s379 + $0x90] sm:$0xf]
        %v1408 = vld [vmem:[%s379 + $0x94] sm:$0xf]
        %v1409 = vld [vmem:[%s379 + $0x98] sm:$0xf]
        %v1410 = vld [vmem:[%s379 + $0x9c] sm:$0xf]
        %v1411 = vld [vmem:[%s379 + $0xa0] sm:$0xf]
        %v1412 = vld [vmem:[%s379 + $0xa4] sm:$0xf]
        %v1413 = vld [vmem:[%s379 + $0xa8] sm:$0xf]
        %v1414 = vld [vmem:[%s379 + $0xac] sm:$0xf]
        %v1415 = vld [vmem:[%s379 + $0xb0] sm:$0xf]
        %v1416 = vld [vmem:[%s379 + $0xb4] sm:$0xf]
        %v1417 = vld [vmem:[%s379 + $0xb8] sm:$0xf]
        %v1418 = vld [vmem:[%s379 + $0xbc] sm:$0xf]
        %v1419 = vld [vmem:[%s379 + $0xc0] sm:$0xf]
        %v1420 = vld [vmem:[%s379 + $0xc4] sm:$0xf]
        %v1421 = vld [vmem:[%s379 + $0xc8] sm:$0xf]
        %v1422 = vld [vmem:[%s379 + $0xcc] sm:$0xf]
        %v1423 = vld [vmem:[%s379 + $0xd0] sm:$0xf]
        %v1424 = vld [vmem:[%s379 + $0xd4] sm:$0xf]
        %v1425 = vld [vmem:[%s379 + $0xd8] sm:$0xf]
        %v1426 = vld [vmem:[%s379 + $0xdc] sm:$0xf]
        %v1427 = vld [vmem:[%s379 + $0xe0] sm:$0xf]
        %v1428 = vld [vmem:[%s379 + $0xe4] sm:$0xf]
        %v1429 = vld [vmem:[%s379 + $0xe8] sm:$0xf]
        %v1430 = vld [vmem:[%s379 + $0xec] sm:$0xf]
        %v1431 = vld [vmem:[%s379 + $0xf0] sm:$0xf]
        %v1432 = vld [vmem:[%s379 + $0xf4] sm:$0xf]
        %v1433 = vld [vmem:[%s379 + $0xf8] sm:$0xf]
        %v1434 = vld [vmem:[%s379 + $0xfc] sm:$0xf]
        %v1499 = vunpack.c.l.b16 %v1371
        %v1500 = vunpack.c.l.b16 %v1372
        %v1501 = vunpack.c.l.b16 %v1373
        %v1502 = vunpack.c.l.b16 %v1374
        %v1503 = vunpack.c.l.b16 %v1375
        %v1504 = vunpack.c.l.b16 %v1376
        %v1505 = vunpack.c.l.b16 %v1377
        %v1506 = vunpack.c.l.b16 %v1378
        %v1507 = vunpack.c.l.b16 %v1379
        %v1508 = vunpack.c.l.b16 %v1380
        %v1509 = vunpack.c.l.b16 %v1381
        %v1510 = vunpack.c.l.b16 %v1382
        %v1511 = vunpack.c.l.b16 %v1383
        %v1512 = vunpack.c.l.b16 %v1384
        %v1513 = vunpack.c.l.b16 %v1385
        %v1514 = vunpack.c.l.b16 %v1386
        %v1515 = vunpack.c.l.b16 %v1387
        %v1516 = vunpack.c.l.b16 %v1388
        %v1517 = vunpack.c.l.b16 %v1389
        %v1518 = vunpack.c.l.b16 %v1390
        %v1519 = vunpack.c.l.b16 %v1391
        %v1520 = vunpack.c.l.b16 %v1392
        %v1521 = vunpack.c.l.b16 %v1393
        %v1522 = vunpack.c.l.b16 %v1394
        %v1523 = vunpack.c.l.b16 %v1395
        %v1524 = vunpack.c.l.b16 %v1396
        %v1525 = vunpack.c.l.b16 %v1397
        %v1526 = vunpack.c.l.b16 %v1398
        %v1527 = vunpack.c.l.b16 %v1399
        %v1528 = vunpack.c.l.b16 %v1400
        %v1529 = vunpack.c.l.b16 %v1401
        %v1530 = vunpack.c.l.b16 %v1402
        %v1531 = vunpack.c.l.b16 %v1403
        %v1532 = vunpack.c.l.b16 %v1404
        %v1533 = vunpack.c.l.b16 %v1405
        %v1534 = vunpack.c.l.b16 %v1406
        %v1535 = vunpack.c.l.b16 %v1407
        %v1536 = vunpack.c.l.b16 %v1408
        %v1537 = vunpack.c.l.b16 %v1409
        %v1538 = vunpack.c.l.b16 %v1410
        %v1539 = vunpack.c.l.b16 %v1411
        %v1540 = vunpack.c.l.b16 %v1412
        %v1541 = vunpack.c.l.b16 %v1413
        %v1542 = vunpack.c.l.b16 %v1414
        %v1543 = vunpack.c.l.b16 %v1415
        %v1544 = vunpack.c.l.b16 %v1416
        %v1545 = vunpack.c.l.b16 %v1417
        %v1546 = vunpack.c.l.b16 %v1418
        %v1547 = vunpack.c.l.b16 %v1419
        %v1548 = vunpack.c.l.b16 %v1420
        %v1549 = vunpack.c.l.b16 %v1421
        %v1550 = vunpack.c.l.b16 %v1422
        %v1551 = vunpack.c.l.b16 %v1423
        %v1552 = vunpack.c.l.b16 %v1424
        %v1553 = vunpack.c.l.b16 %v1425
        %v1554 = vunpack.c.l.b16 %v1426
        %v1555 = vunpack.c.l.b16 %v1427
        %v1556 = vunpack.c.l.b16 %v1428
        %v1557 = vunpack.c.l.b16 %v1429
        %v1558 = vunpack.c.l.b16 %v1430
        %v1559 = vunpack.c.l.b16 %v1431
        %v1560 = vunpack.c.l.b16 %v1432
        %v1561 = vunpack.c.l.b16 %v1433
        %v1562 = vunpack.c.l.b16 %v1434
        %v1563 = vpack.c.b16 %v1500, %v1499
        %v1564 = vpack.c.b16 %v1502, %v1501
        %v1565 = vpack.c.b16 %v1504, %v1503
        %v1566 = vpack.c.b16 %v1506, %v1505
        %v1567 = vpack.c.b16 %v1508, %v1507
        %v1568 = vpack.c.b16 %v1510, %v1509
        %v1569 = vpack.c.b16 %v1512, %v1511
        %v1570 = vpack.c.b16 %v1514, %v1513
        %v1571 = vpack.c.b16 %v1516, %v1515
        %v1572 = vpack.c.b16 %v1518, %v1517
        %v1573 = vpack.c.b16 %v1520, %v1519
        %v1574 = vpack.c.b16 %v1522, %v1521
        %v1575 = vpack.c.b16 %v1524, %v1523
        %v1576 = vpack.c.b16 %v1526, %v1525
        %v1577 = vpack.c.b16 %v1528, %v1527
        %v1578 = vpack.c.b16 %v1530, %v1529
        %v1579 = vpack.c.b16 %v1532, %v1531
        %v1580 = vpack.c.b16 %v1534, %v1533
        %v1581 = vpack.c.b16 %v1536, %v1535
        %v1582 = vpack.c.b16 %v1538, %v1537
        %v1583 = vpack.c.b16 %v1540, %v1539
        %v1584 = vpack.c.b16 %v1542, %v1541
        %v1585 = vpack.c.b16 %v1544, %v1543
        %v1586 = vpack.c.b16 %v1546, %v1545
        %v1587 = vpack.c.b16 %v1548, %v1547
        %v1588 = vpack.c.b16 %v1550, %v1549
        %v1589 = vpack.c.b16 %v1552, %v1551
        %v1590 = vpack.c.b16 %v1554, %v1553
        %v1591 = vpack.c.b16 %v1556, %v1555
        %v1592 = vpack.c.b16 %v1558, %v1557
        %v1593 = vpack.c.b16 %v1560, %v1559
        %v1594 = vpack.c.b16 %v1562, %v1561
        %1627 = vmatprep.subr.bf16.mxu0 0
        %1628 = vmatpush1.bf16.msra.mxu0 %v1570
        %1629 = vmatprep.subr.bf16.mxu0 0
        %1630 = vmatpush1.bf16.msra.mxu0 %v1569
        %1631 = vmatprep.subr.bf16.mxu0 0
        %1632 = vmatpush1.bf16.msra.mxu0 %v1568
        %1633 = vmatprep.subr.bf16.mxu0 0
        %1634 = vmatpush1.bf16.msra.mxu0 %v1567
        %1635 = vmatprep.subr.bf16.mxu0 0
        %1636 = vmatpush1.bf16.msra.mxu0 %v1566
        %1637 = vmatprep.subr.bf16.mxu0 0
        %1638 = vmatpush1.bf16.msra.mxu0 %v1565
        %1639 = vmatprep.subr.bf16.mxu0 0
        %1640 = vmatpush1.bf16.msra.mxu0 %v1564
        %1641 = vmatprep.subr.bf16.mxu0 0
        %1642 = vmatpush1.bf16.msra.mxu0 %v1563
        %1643 = vmatprep.subr.bf16.mxu0 0
        %1644 = vmatpush2.bf16.msra.mxu0 %v1578
        %1645 = vmatprep.subr.bf16.mxu0 0
        %1646 = vmatpush2.bf16.msra.mxu0 %v1577
        %1647 = vmatprep.subr.bf16.mxu0 0
        %1648 = vmatpush2.bf16.msra.mxu0 %v1576
        %1649 = vmatprep.subr.bf16.mxu0 0
        %1650 = vmatpush2.bf16.msra.mxu0 %v1575
        %1651 = vmatprep.subr.bf16.mxu0 0
        %1652 = vmatpush2.bf16.msra.mxu0 %v1574
        %1653 = vmatprep.subr.bf16.mxu0 0
        %1654 = vmatpush2.bf16.msra.mxu0 %v1573
        %1655 = vmatprep.subr.bf16.mxu0 0
        %1656 = vmatpush2.bf16.msra.mxu0 %v1572
        %1657 = vmatprep.subr.bf16.mxu0 0
        %1658 = vmatpush2.bf16.msra.mxu0 %v1571
        %1659 = vmatprep.mubr.bf16.mxu0 %v1308
        %1660 = vmatmul.mubr.bf16.gmra.mxu0 %v1307
        %v1661 = vpop.f32.mrf.mxu0
        %v1662 = vadd.f32 0.0, %v1661
        %v1663 = vpop.f32.mrf.mxu0
        %v1664 = vpop.f32.mrf.mxu0
        %v1665 = vadd.f32 0.0, %v1664
        %v1666 = vpop.f32.mrf.mxu0
        %1667 = vmatprep.mubr.bf16.mxu0 %v1312
        %1668 = vmatmul.mubr.bf16.gmra.mxu0 %v1311
        %v1669 = vpop.f32.mrf.mxu0
        %v1670 = vadd.f32 0.0, %v1669
        %v1671 = vpop.f32.mrf.mxu0
        %v1672 = vpop.f32.mrf.mxu0
        %v1673 = vadd.f32 0.0, %v1672
        %v1674 = vpop.f32.mrf.mxu0
        %1675 = vmatprep.mubr.bf16.mxu0 %v1316
        %1676 = vmatmul.mubr.bf16.gmra.mxu0 %v1315
        %v1677 = vpop.f32.mrf.mxu0
        %v1678 = vadd.f32 0.0, %v1677
        %v1679 = vpop.f32.mrf.mxu0
        %v1680 = vpop.f32.mrf.mxu0
        %v1681 = vadd.f32 0.0, %v1680
        %v1682 = vpop.f32.mrf.mxu0
        %1683 = vmatprep.mubr.bf16.mxu0 %v1320
        %1684 = vmatmul.mubr.bf16.gmra.mxu0 %v1319
        %v1685 = vpop.f32.mrf.mxu0
        %v1686 = vadd.f32 0.0, %v1685
        %v1687 = vpop.f32.mrf.mxu0
        %v1688 = vpop.f32.mrf.mxu0
        %v1689 = vadd.f32 0.0, %v1688
        %v1690 = vpop.f32.mrf.mxu0
        %1691 = vmatprep.mubr.bf16.mxu0 %v1324
        %1692 = vmatmul.mubr.bf16.gmra.mxu0 %v1323
        %v1693 = vpop.f32.mrf.mxu0
        %v1694 = vadd.f32 0.0, %v1693
        %v1695 = vpop.f32.mrf.mxu0
        %v1696 = vpop.f32.mrf.mxu0
        %v1697 = vadd.f32 0.0, %v1696
        %v1698 = vpop.f32.mrf.mxu0
        %1699 = vmatprep.mubr.bf16.mxu0 %v1328
        %1700 = vmatmul.mubr.bf16.gmra.mxu0 %v1327
        %v1701 = vpop.f32.mrf.mxu0
        %v1702 = vadd.f32 0.0, %v1701
        %v1703 = vpop.f32.mrf.mxu0
        %v1704 = vpop.f32.mrf.mxu0
        %v1705 = vadd.f32 0.0, %v1704
        %v1706 = vpop.f32.mrf.mxu0
        %1707 = vmatprep.mubr.bf16.mxu0 %v1332
        %1708 = vmatmul.mubr.bf16.gmra.mxu0 %v1331
        %v1709 = vpop.f32.mrf.mxu0
        %v1710 = vadd.f32 0.0, %v1709
        %v1711 = vpop.f32.mrf.mxu0
        %v1712 = vpop.f32.mrf.mxu0
        %v1713 = vadd.f32 0.0, %v1712
        %v1714 = vpop.f32.mrf.mxu0
        %1715 = vmatprep.mubr.bf16.mxu0 %v1336
        %1716 = vmatmul.mubr.bf16.gmra.mxu0 %v1335
        %v1717 = vpop.f32.mrf.mxu0
        %v1718 = vadd.f32 0.0, %v1717
        %v1719 = vpop.f32.mrf.mxu0
        %v1720 = vpop.f32.mrf.mxu0
        %v1721 = vadd.f32 0.0, %v1720
        %v1722 = vpop.f32.mrf.mxu0
        %1723 = vmatprep.mubr.bf16.mxu0 %v1340
        %1724 = vmatmul.mubr.bf16.gmra.mxu0 %v1339
        %v1725 = vpop.f32.mrf.mxu0
        %v1726 = vadd.f32 0.0, %v1725
        %v1727 = vpop.f32.mrf.mxu0
        %v1728 = vpop.f32.mrf.mxu0
        %v1729 = vadd.f32 0.0, %v1728
        %v1730 = vpop.f32.mrf.mxu0
        %1731 = vmatprep.mubr.bf16.mxu0 %v1344
        %1732 = vmatmul.mubr.bf16.gmra.mxu0 %v1343
        %v1733 = vpop.f32.mrf.mxu0
        %v1734 = vadd.f32 0.0, %v1733
        %v1735 = vpop.f32.mrf.mxu0
        %v1736 = vpop.f32.mrf.mxu0
        %v1737 = vadd.f32 0.0, %v1736
        %v1738 = vpop.f32.mrf.mxu0
        %1739 = vmatprep.mubr.bf16.mxu0 %v1348
        %1740 = vmatmul.mubr.bf16.gmra.mxu0 %v1347
        %v1741 = vpop.f32.mrf.mxu0
        %v1742 = vadd.f32 0.0, %v1741
        %v1743 = vpop.f32.mrf.mxu0
        %v1744 = vpop.f32.mrf.mxu0
        %v1745 = vadd.f32 0.0, %v1744
        %v1746 = vpop.f32.mrf.mxu0
        %1747 = vmatprep.mubr.bf16.mxu0 %v1352
        %1748 = vmatmul.mubr.bf16.gmra.mxu0 %v1351
        %v1749 = vpop.f32.mrf.mxu0
        %v1750 = vadd.f32 0.0, %v1749
        %v1751 = vpop.f32.mrf.mxu0
        %v1752 = vpop.f32.mrf.mxu0
        %v1753 = vadd.f32 0.0, %v1752
        %v1754 = vpop.f32.mrf.mxu0
        %1755 = vmatprep.mubr.bf16.mxu0 %v1356
        %1756 = vmatmul.mubr.bf16.gmra.mxu0 %v1355
        %v1757 = vpop.f32.mrf.mxu0
        %v1758 = vadd.f32 0.0, %v1757
        %v1759 = vpop.f32.mrf.mxu0
        %v1760 = vpop.f32.mrf.mxu0
        %v1761 = vadd.f32 0.0, %v1760
        %v1762 = vpop.f32.mrf.mxu0
        %1763 = vmatprep.mubr.bf16.mxu0 %v1360
        %1764 = vmatmul.mubr.bf16.gmra.mxu0 %v1359
        %v1765 = vpop.f32.mrf.mxu0
        %v1766 = vadd.f32 0.0, %v1765
        %v1767 = vpop.f32.mrf.mxu0
        %v1768 = vpop.f32.mrf.mxu0
        %v1769 = vadd.f32 0.0, %v1768
        %v1770 = vpop.f32.mrf.mxu0
        %1771 = vmatprep.mubr.bf16.mxu0 %v1364
        %1772 = vmatmul.mubr.bf16.gmra.mxu0 %v1363
        %v1773 = vpop.f32.mrf.mxu0
        %v1774 = vadd.f32 0.0, %v1773
        %v1775 = vpop.f32.mrf.mxu0
        %v1776 = vpop.f32.mrf.mxu0
        %v1777 = vadd.f32 0.0, %v1776
        %v1778 = vpop.f32.mrf.mxu0
        %1779 = vmatprep.mubr.bf16.mxu0 %v1368
        %1780 = vmatmul.mubr.bf16.gmra.mxu0 %v1367
        %v1781 = vpop.f32.mrf.mxu0
        %v1782 = vadd.f32 0.0, %v1781
        %v1783 = vpop.f32.mrf.mxu0
        %v1784 = vpop.f32.mrf.mxu0
        %v1785 = vadd.f32 0.0, %v1784
        %v1786 = vpop.f32.mrf.mxu0
        %1787 = vdwg.mxu0
        %1788 = vmatprep.subr.bf16.mxu0 0
        %1789 = vmatpush1.bf16.msra.mxu0 %v1586
        %1790 = vmatprep.subr.bf16.mxu0 0
        %1791 = vmatpush1.bf16.msra.mxu0 %v1585
        %1792 = vmatprep.subr.bf16.mxu0 0
        %1793 = vmatpush1.bf16.msra.mxu0 %v1584
        %1794 = vmatprep.subr.bf16.mxu0 0
        %1795 = vmatpush1.bf16.msra.mxu0 %v1583
        %1796 = vmatprep.subr.bf16.mxu0 0
        %1797 = vmatpush1.bf16.msra.mxu0 %v1582
        %1798 = vmatprep.subr.bf16.mxu0 0
        %1799 = vmatpush1.bf16.msra.mxu0 %v1581
        %1800 = vmatprep.subr.bf16.mxu0 0
        %1801 = vmatpush1.bf16.msra.mxu0 %v1580
        %1802 = vmatprep.subr.bf16.mxu0 0
        %1803 = vmatpush1.bf16.msra.mxu0 %v1579
        %1804 = vmatprep.subr.bf16.mxu0 0
        %1805 = vmatpush2.bf16.msra.mxu0 %v1594
        %1806 = vmatprep.subr.bf16.mxu0 0
        %1807 = vmatpush2.bf16.msra.mxu0 %v1593
        %1808 = vmatprep.subr.bf16.mxu0 0
        %1809 = vmatpush2.bf16.msra.mxu0 %v1592
        %1810 = vmatprep.subr.bf16.mxu0 0
        %1811 = vmatpush2.bf16.msra.mxu0 %v1591
        %1812 = vmatprep.subr.bf16.mxu0 0
        %1813 = vmatpush2.bf16.msra.mxu0 %v1590
        %1814 = vmatprep.subr.bf16.mxu0 0
        %1815 = vmatpush2.bf16.msra.mxu0 %v1589
        %1816 = vmatprep.subr.bf16.mxu0 0
        %1817 = vmatpush2.bf16.msra.mxu0 %v1588
        %1818 = vmatprep.subr.bf16.mxu0 0
        %1819 = vmatpush2.bf16.msra.mxu0 %v1587
        %1820 = vmatprep.mubr.bf16.mxu0 %v1310
        %1821 = vmatmul.mubr.bf16.gmra.mxu0 %v1309
        %v1822 = vpop.f32.mrf.mxu0
        %v1823 = vadd.f32 %v1662, %v1822
        %v1824 = vpop.f32.mrf.mxu0
        %v1825 = vpop.f32.mrf.mxu0
        %v1826 = vadd.f32 %v1665, %v1825
        %v1827 = vpop.f32.mrf.mxu0
        %1828 = vmatprep.mubr.bf16.mxu0 %v1314
        %1829 = vmatmul.mubr.bf16.gmra.mxu0 %v1313
        %v1830 = vpop.f32.mrf.mxu0
        %v1831 = vadd.f32 %v1670, %v1830
        %v1832 = vpop.f32.mrf.mxu0
        %v1833 = vpop.f32.mrf.mxu0
        %v1834 = vadd.f32 %v1673, %v1833
        %v1835 = vpop.f32.mrf.mxu0
        %1836 = vmatprep.mubr.bf16.mxu0 %v1318
        %1837 = vmatmul.mubr.bf16.gmra.mxu0 %v1317
        %v1838 = vpop.f32.mrf.mxu0
        %v1839 = vadd.f32 %v1678, %v1838
        %v1840 = vpop.f32.mrf.mxu0
        %v1841 = vpop.f32.mrf.mxu0
        %v1842 = vadd.f32 %v1681, %v1841
        %v1843 = vpop.f32.mrf.mxu0
        %1844 = vmatprep.mubr.bf16.mxu0 %v1322
        %1845 = vmatmul.mubr.bf16.gmra.mxu0 %v1321
        %v1846 = vpop.f32.mrf.mxu0
        %v1847 = vadd.f32 %v1686, %v1846
        %v1848 = vpop.f32.mrf.mxu0
        %v1849 = vpop.f32.mrf.mxu0
        %v1850 = vadd.f32 %v1689, %v1849
        %v1851 = vpop.f32.mrf.mxu0
        %1852 = vmatprep.mubr.bf16.mxu0 %v1326
        %1853 = vmatmul.mubr.bf16.gmra.mxu0 %v1325
        %v1854 = vpop.f32.mrf.mxu0
        %v1855 = vadd.f32 %v1694, %v1854
        %v1856 = vpop.f32.mrf.mxu0
        %v1857 = vpop.f32.mrf.mxu0
        %v1858 = vadd.f32 %v1697, %v1857
        %v1859 = vpop.f32.mrf.mxu0
        %1860 = vmatprep.mubr.bf16.mxu0 %v1330
        %1861 = vmatmul.mubr.bf16.gmra.mxu0 %v1329
        %v1862 = vpop.f32.mrf.mxu0
        %v1863 = vadd.f32 %v1702, %v1862
        %v1864 = vpop.f32.mrf.mxu0
        %v1865 = vpop.f32.mrf.mxu0
        %v1866 = vadd.f32 %v1705, %v1865
        %v1867 = vpop.f32.mrf.mxu0
        %1868 = vmatprep.mubr.bf16.mxu0 %v1334
        %1869 = vmatmul.mubr.bf16.gmra.mxu0 %v1333
        %v1870 = vpop.f32.mrf.mxu0
        %v1871 = vadd.f32 %v1710, %v1870
        %v1872 = vpop.f32.mrf.mxu0
        %v1873 = vpop.f32.mrf.mxu0
        %v1874 = vadd.f32 %v1713, %v1873
        %v1875 = vpop.f32.mrf.mxu0
        %1876 = vmatprep.mubr.bf16.mxu0 %v1338
        %1877 = vmatmul.mubr.bf16.gmra.mxu0 %v1337
        %v1878 = vpop.f32.mrf.mxu0
        %v1879 = vadd.f32 %v1718, %v1878
        %v1880 = vpop.f32.mrf.mxu0
        %v1881 = vpop.f32.mrf.mxu0
        %v1882 = vadd.f32 %v1721, %v1881
        %v1883 = vpop.f32.mrf.mxu0
        %1884 = vmatprep.mubr.bf16.mxu0 %v1342
        %1885 = vmatmul.mubr.bf16.gmra.mxu0 %v1341
        %v1886 = vpop.f32.mrf.mxu0
        %v1887 = vadd.f32 %v1726, %v1886
        %v1888 = vpop.f32.mrf.mxu0
        %v1889 = vpop.f32.mrf.mxu0
        %v1890 = vadd.f32 %v1729, %v1889
        %v1891 = vpop.f32.mrf.mxu0
        %1892 = vmatprep.mubr.bf16.mxu0 %v1346
        %1893 = vmatmul.mubr.bf16.gmra.mxu0 %v1345
        %v1894 = vpop.f32.mrf.mxu0
        %v1895 = vadd.f32 %v1734, %v1894
        %v1896 = vpop.f32.mrf.mxu0
        %v1897 = vpop.f32.mrf.mxu0
        %v1898 = vadd.f32 %v1737, %v1897
        %v1899 = vpop.f32.mrf.mxu0
        %1900 = vmatprep.mubr.bf16.mxu0 %v1350
        %1901 = vmatmul.mubr.bf16.gmra.mxu0 %v1349
        %v1902 = vpop.f32.mrf.mxu0
        %v1903 = vadd.f32 %v1742, %v1902
        %v1904 = vpop.f32.mrf.mxu0
        %v1905 = vpop.f32.mrf.mxu0
        %v1906 = vadd.f32 %v1745, %v1905
        %v1907 = vpop.f32.mrf.mxu0
        %1908 = vmatprep.mubr.bf16.mxu0 %v1354
        %1909 = vmatmul.mubr.bf16.gmra.mxu0 %v1353
        %v1910 = vpop.f32.mrf.mxu0
        %v1911 = vadd.f32 %v1750, %v1910
        %v1912 = vpop.f32.mrf.mxu0
        %v1913 = vpop.f32.mrf.mxu0
        %v1914 = vadd.f32 %v1753, %v1913
        %v1915 = vpop.f32.mrf.mxu0
        %1916 = vmatprep.mubr.bf16.mxu0 %v1358
        %1917 = vmatmul.mubr.bf16.gmra.mxu0 %v1357
        %v1918 = vpop.f32.mrf.mxu0
        %v1919 = vadd.f32 %v1758, %v1918
        %v1920 = vpop.f32.mrf.mxu0
        %v1921 = vpop.f32.mrf.mxu0
        %v1922 = vadd.f32 %v1761, %v1921
        %v1923 = vpop.f32.mrf.mxu0
        %1924 = vmatprep.mubr.bf16.mxu0 %v1362
        %1925 = vmatmul.mubr.bf16.gmra.mxu0 %v1361
        %v1926 = vpop.f32.mrf.mxu0
        %v1927 = vadd.f32 %v1766, %v1926
        %v1928 = vpop.f32.mrf.mxu0
        %v1929 = vpop.f32.mrf.mxu0
        %v1930 = vadd.f32 %v1769, %v1929
        %v1931 = vpop.f32.mrf.mxu0
        %1932 = vmatprep.mubr.bf16.mxu0 %v1366
        %1933 = vmatmul.mubr.bf16.gmra.mxu0 %v1365
        %v1934 = vpop.f32.mrf.mxu0
        %v1935 = vadd.f32 %v1774, %v1934
        %v1936 = vpop.f32.mrf.mxu0
        %v1937 = vpop.f32.mrf.mxu0
        %v1938 = vadd.f32 %v1777, %v1937
        %v1939 = vpop.f32.mrf.mxu0
        %1940 = vmatprep.mubr.bf16.mxu0 %v1370
        %1941 = vmatmul.mubr.bf16.gmra.mxu0 %v1369
        %v1942 = vpop.f32.mrf.mxu0
        %v1943 = vadd.f32 %v1782, %v1942
        %v1944 = vpop.f32.mrf.mxu0
        %v1945 = vpop.f32.mrf.mxu0
        %v1946 = vadd.f32 %v1785, %v1945
        %v1947 = vpop.f32.mrf.mxu0
        %1948 = vdwg.mxu0
        %v1949 = vadd.f32 %v1275, %v1823
        %v1950 = vadd.f32 %v1276, %v1826
        %v1951 = vadd.f32 %v1277, %v1831
        %v1952 = vadd.f32 %v1278, %v1834
        %v1953 = vadd.f32 %v1279, %v1839
        %v1954 = vadd.f32 %v1280, %v1842
        %v1955 = vadd.f32 %v1281, %v1847
        %v1956 = vadd.f32 %v1282, %v1850
        %v1957 = vadd.f32 %v1283, %v1855
        %v1958 = vadd.f32 %v1284, %v1858
        %v1959 = vadd.f32 %v1285, %v1863
        %v1960 = vadd.f32 %v1286, %v1866
        %v1961 = vadd.f32 %v1287, %v1871
        %v1962 = vadd.f32 %v1288, %v1874
        %v1963 = vadd.f32 %v1289, %v1879
        %v1964 = vadd.f32 %v1290, %v1882
        %v1965 = vadd.f32 %v1291, %v1887
        %v1966 = vadd.f32 %v1292, %v1890
        %v1967 = vadd.f32 %v1293, %v1895
        %v1968 = vadd.f32 %v1294, %v1898
        %v1969 = vadd.f32 %v1295, %v1903
        %v1970 = vadd.f32 %v1296, %v1906
        %v1971 = vadd.f32 %v1297, %v1911
        %v1972 = vadd.f32 %v1298, %v1914
        %v1973 = vadd.f32 %v1299, %v1919
        %v1974 = vadd.f32 %v1300, %v1922
        %v1975 = vadd.f32 %v1301, %v1927
        %v1976 = vadd.f32 %v1302, %v1930
        %v1977 = vadd.f32 %v1303, %v1935
        %v1978 = vadd.f32 %v1304, %v1938
        %v1979 = vadd.f32 %v1305, %v1943
        %v1980 = vadd.f32 %v1306, %v1946
        %1981 = vst [vmem:[#allocation2] sm:$0xff] %v1949
        %1982 = vst [vmem:[#allocation2 + $0x8] sm:$0xff] %v1950
        %1983 = vst [vmem:[#allocation2 + $0x10] sm:$0xff] %v1951
        %1984 = vst [vmem:[#allocation2 + $0x18] sm:$0xff] %v1952
        %1985 = vst [vmem:[#allocation2 + $0x20] sm:$0xff] %v1953
        %1986 = vst [vmem:[#allocation2 + $0x28] sm:$0xff] %v1954
        %1987 = vst [vmem:[#allocation2 + $0x30] sm:$0xff] %v1955
        %1988 = vst [vmem:[#allocation2 + $0x38] sm:$0xff] %v1956
        %1989 = vst [vmem:[#allocation2 + $0x40] sm:$0xff] %v1957
        %1990 = vst [vmem:[#allocation2 + $0x48] sm:$0xff] %v1958
        %1991 = vst [vmem:[#allocation2 + $0x50] sm:$0xff] %v1959
        %1992 = vst [vmem:[#allocation2 + $0x58] sm:$0xff] %v1960
        %1993 = vst [vmem:[#allocation2 + $0x60] sm:$0xff] %v1961
        %1994 = vst [vmem:[#allocation2 + $0x68] sm:$0xff] %v1962
        %1995 = vst [vmem:[#allocation2 + $0x70] sm:$0xff] %v1963
        %1996 = vst [vmem:[#allocation2 + $0x78] sm:$0xff] %v1964
        %1997 = vst [vmem:[#allocation2 + $0x80] sm:$0xff] %v1965
        %1998 = vst [vmem:[#allocation2 + $0x88] sm:$0xff] %v1966
        %1999 = vst [vmem:[#allocation2 + $0x90] sm:$0xff] %v1967
        %2000 = vst [vmem:[#allocation2 + $0x98] sm:$0xff] %v1968
        %2001 = vst [vmem:[#allocation2 + $0xa0] sm:$0xff] %v1969
        %2002 = vst [vmem:[#allocation2 + $0xa8] sm:$0xff] %v1970
        %2003 = vst [vmem:[#allocation2 + $0xb0] sm:$0xff] %v1971
        %2004 = vst [vmem:[#allocation2 + $0xb8] sm:$0xff] %v1972
        %2005 = vst [vmem:[#allocation2 + $0xc0] sm:$0xff] %v1973
        %2006 = vst [vmem:[#allocation2 + $0xc8] sm:$0xff] %v1974
        %2007 = vst [vmem:[#allocation2 + $0xd0] sm:$0xff] %v1975
        %2008 = vst [vmem:[#allocation2 + $0xd8] sm:$0xff] %v1976
        %2009 = vst [vmem:[#allocation2 + $0xe0] sm:$0xff] %v1977
        %2010 = vst [vmem:[#allocation2 + $0xe8] sm:$0xff] %v1978
        %2011 = vst [vmem:[#allocation2 + $0xf0] sm:$0xff] %v1979
        %2012 = vst [vmem:[#allocation2 + $0xf8] sm:$0xff] %v1980
        %p2013 = scmp.eq.s32.totalorder %s24, 1
        // Predicated region
        $region68: #{feed_forward.1} parent=58 // pred_check
          %p2014 = pneg %p2013
        $region69: #{feed_forward.1} parent=58 // pred_check_branch
          %2016 = sbr.rel (%p2014) target = $region71
        $region70: #{feed_forward.1} parent=58 // pred_region
          %v2017 = vld [vmem:[#allocation2] sm:$0xff]
          %v2018 = vld [vmem:[#allocation2 + $0x8] sm:$0xff]
          %v2019 = vld [vmem:[#allocation2 + $0x10] sm:$0xff]
          %v2020 = vld [vmem:[#allocation2 + $0x18] sm:$0xff]
          %v2021 = vld [vmem:[#allocation2 + $0x20] sm:$0xff]
          %v2022 = vld [vmem:[#allocation2 + $0x28] sm:$0xff]
          %v2023 = vld [vmem:[#allocation2 + $0x30] sm:$0xff]
          %v2024 = vld [vmem:[#allocation2 + $0x38] sm:$0xff]
          %v2025 = vld [vmem:[#allocation2 + $0x40] sm:$0xff]
          %v2026 = vld [vmem:[#allocation2 + $0x48] sm:$0xff]
          %v2027 = vld [vmem:[#allocation2 + $0x50] sm:$0xff]
          %v2028 = vld [vmem:[#allocation2 + $0x58] sm:$0xff]
          %v2029 = vld [vmem:[#allocation2 + $0x60] sm:$0xff]
          %v2030 = vld [vmem:[#allocation2 + $0x68] sm:$0xff]
          %v2031 = vld [vmem:[#allocation2 + $0x70] sm:$0xff]
          %v2032 = vld [vmem:[#allocation2 + $0x78] sm:$0xff]
          %v2033 = vld [vmem:[#allocation2 + $0x80] sm:$0xff]
          %v2034 = vld [vmem:[#allocation2 + $0x88] sm:$0xff]
          %v2035 = vld [vmem:[#allocation2 + $0x90] sm:$0xff]
          %v2036 = vld [vmem:[#allocation2 + $0x98] sm:$0xff]
          %v2037 = vld [vmem:[#allocation2 + $0xa0] sm:$0xff]
          %v2038 = vld [vmem:[#allocation2 + $0xa8] sm:$0xff]
          %v2039 = vld [vmem:[#allocation2 + $0xb0] sm:$0xff]
          %v2040 = vld [vmem:[#allocation2 + $0xb8] sm:$0xff]
          %v2041 = vld [vmem:[#allocation2 + $0xc0] sm:$0xff]
          %v2042 = vld [vmem:[#allocation2 + $0xc8] sm:$0xff]
          %v2043 = vld [vmem:[#allocation2 + $0xd0] sm:$0xff]
          %v2044 = vld [vmem:[#allocation2 + $0xd8] sm:$0xff]
          %v2045 = vld [vmem:[#allocation2 + $0xe0] sm:$0xff]
          %v2046 = vld [vmem:[#allocation2 + $0xe8] sm:$0xff]
          %v2047 = vld [vmem:[#allocation2 + $0xf0] sm:$0xff]
          %v2048 = vld [vmem:[#allocation2 + $0xf8] sm:$0xff]
          %v2049 = vld [vmem:[%s4] sm:$0x1]
          %v2051 = vlaneseq
          %v2052 = vshrl.u32 %v2051, 7
          %v2053 = vsub.s32 0, %v2052
          %v2054 = vrot.slane %v2049, %v2053
          %v2056 = vadd.f32 %v2017, %v2054
          %v2057 = vadd.f32 %v2018, %v2054
          %v2058 = vadd.f32 %v2019, %v2054
          %v2059 = vadd.f32 %v2020, %v2054
          %v2060 = vadd.f32 %v2021, %v2054
          %v2061 = vadd.f32 %v2022, %v2054
          %v2062 = vadd.f32 %v2023, %v2054
          %v2063 = vadd.f32 %v2024, %v2054
          %v2064 = vadd.f32 %v2025, %v2054
          %v2065 = vadd.f32 %v2026, %v2054
          %v2066 = vadd.f32 %v2027, %v2054
          %v2067 = vadd.f32 %v2028, %v2054
          %v2068 = vadd.f32 %v2029, %v2054
          %v2069 = vadd.f32 %v2030, %v2054
          %v2070 = vadd.f32 %v2031, %v2054
          %v2071 = vadd.f32 %v2032, %v2054
          %v2072 = vadd.f32 %v2033, %v2054
          %v2073 = vadd.f32 %v2034, %v2054
          %v2074 = vadd.f32 %v2035, %v2054
          %v2075 = vadd.f32 %v2036, %v2054
          %v2076 = vadd.f32 %v2037, %v2054
          %v2077 = vadd.f32 %v2038, %v2054
          %v2078 = vadd.f32 %v2039, %v2054
          %v2079 = vadd.f32 %v2040, %v2054
          %v2080 = vadd.f32 %v2041, %v2054
          %v2081 = vadd.f32 %v2042, %v2054
          %v2082 = vadd.f32 %v2043, %v2054
          %v2083 = vadd.f32 %v2044, %v2054
          %v2084 = vadd.f32 %v2045, %v2054
          %v2085 = vadd.f32 %v2046, %v2054
          %v2086 = vadd.f32 %v2047, %v2054
          %v2087 = vadd.f32 %v2048, %v2054
          %2088 = vst [vmem:[%s362] sm:$0xff] %v2056
          %2089 = vst [vmem:[%s362 + $0x8] sm:$0xff] %v2057
          %2090 = vst [vmem:[%s362 + $0x10] sm:$0xff] %v2058
          %2091 = vst [vmem:[%s362 + $0x18] sm:$0xff] %v2059
          %2092 = vst [vmem:[%s362 + $0x20] sm:$0xff] %v2060
          %2093 = vst [vmem:[%s362 + $0x28] sm:$0xff] %v2061
          %2094 = vst [vmem:[%s362 + $0x30] sm:$0xff] %v2062
          %2095 = vst [vmem:[%s362 + $0x38] sm:$0xff] %v2063
          %2096 = vst [vmem:[%s362 + $0x40] sm:$0xff] %v2064
          %2097 = vst [vmem:[%s362 + $0x48] sm:$0xff] %v2065
          %2098 = vst [vmem:[%s362 + $0x50] sm:$0xff] %v2066
          %2099 = vst [vmem:[%s362 + $0x58] sm:$0xff] %v2067
          %2100 = vst [vmem:[%s362 + $0x60] sm:$0xff] %v2068
          %2101 = vst [vmem:[%s362 + $0x68] sm:$0xff] %v2069
          %2102 = vst [vmem:[%s362 + $0x70] sm:$0xff] %v2070
          %2103 = vst [vmem:[%s362 + $0x78] sm:$0xff] %v2071
          %2104 = vst [vmem:[%s362 + $0x80] sm:$0xff] %v2072
          %2105 = vst [vmem:[%s362 + $0x88] sm:$0xff] %v2073
          %2106 = vst [vmem:[%s362 + $0x90] sm:$0xff] %v2074
          %2107 = vst [vmem:[%s362 + $0x98] sm:$0xff] %v2075
          %2108 = vst [vmem:[%s362 + $0xa0] sm:$0xff] %v2076
          %2109 = vst [vmem:[%s362 + $0xa8] sm:$0xff] %v2077
          %2110 = vst [vmem:[%s362 + $0xb0] sm:$0xff] %v2078
          %2111 = vst [vmem:[%s362 + $0xb8] sm:$0xff] %v2079
          %2112 = vst [vmem:[%s362 + $0xc0] sm:$0xff] %v2080
          %2113 = vst [vmem:[%s362 + $0xc8] sm:$0xff] %v2081
          %2114 = vst [vmem:[%s362 + $0xd0] sm:$0xff] %v2082
          %2115 = vst [vmem:[%s362 + $0xd8] sm:$0xff] %v2083
          %2116 = vst [vmem:[%s362 + $0xe0] sm:$0xff] %v2084
          %2117 = vst [vmem:[%s362 + $0xe8] sm:$0xff] %v2085
          %2118 = vst [vmem:[%s362 + $0xf0] sm:$0xff] %v2086
          %2119 = vst [vmem:[%s362 + $0xf8] sm:$0xff] %v2087
        $region71: #{feed_forward.1} parent=58 // pred_fallthru
          _
        %s2120 = sand.u32 %s164, 1
        %s2121 = scalar_lea.sflag [#allocation5], %s2120
        %s2122 = sand.u32 %s164, 1
        %s2123 = smul.addr %s2122, 256
        %s2124 = scalar_lea.vmem [#allocation4], %s2123
        // Predicated region
        $region72: #{feed_forward.1} parent=58 // pred_check
          %p2125 = pneg %p174
        $region73: #{feed_forward.1} parent=58 // pred_check_branch
          %2127 = sbr.rel (%p2125) target = $region75
        $region74: #{feed_forward.1} parent=58 // pred_region
          %s2128 = smul.u32 32, %s23
          %s2130 = ssub.s32 4096, 4096
          %2131 = vsyncadd %s2121, %s2130
          %s2132 = smul.addr %s2128, 128
          %s2133 = scalar_lea.hbm %s5, %s2132
          %s2134 = sshll.u32 %s2124, 4
          %s2135 = int_to_ptr.vmem [resolvable:$true] %s2134
          %2140 = dma.vmem_to_hbm [thread:$0]  %s2135, 4096, %s2133, %s2121, 128, 128, 8
        $region75: #{feed_forward.1} parent=58 // pred_fallthru
          _
      $region59: #{feed_forward.1} parent=5 // pred_fallthru
        _
      %p2141 = scmp.le.s32.totalorder 2, %s14
      // Predicated region
      $region76: #{feed_forward.1} parent=5 // pred_check
        %p2142 = pneg %p2141
      $region77: #{feed_forward.1} parent=5 // pred_check_branch
        %2144 = sbr.rel (%p2142) target = $region79
      $region78: #{feed_forward.1} parent=5 // pred_region
        %s2145 = ssub.s32 %s14, 2
        // Predicated region
        $region80: #{feed_forward.1} parent=78 // pred_check
          %p2146 = pneg %p180
        $region81: #{feed_forward.1} parent=78 // pred_check_branch
          %2148 = sbr.rel (%p2146) target = $region83
        $region82: #{feed_forward.1} parent=78 // pred_region
          %s2149 = sand.u32 %s165, 1
          %s2150 = scalar_lea.sflag [#allocation5], %s2149
          %s2151 = sand.u32 %s165, 1
          %s2152 = smul.addr %s2151, 256
          %s2153 = scalar_lea.vmem [#allocation4], %s2152
          %2154 = dma.done %s2150, 4096
        $region83: #{feed_forward.1} parent=78 // pred_fallthru
          _
      $region79: #{feed_forward.1} parent=5 // pred_fallthru
        _
    $region6: #{feed_forward.1} parent=1 // loop_footer
      %s18 = sadd.s32 1, %s14
    $region7: #{feed_forward.1} parent=1 // loop_footer_branch
      %13 = sbr.rel target = $region3
    $region8: #{feed_forward.1} parent=1 // loop_exit
      _
    %2155 = vsyncpa [#allocation5], 1
    %s2156 = scalar_lea.sflag [#allocation5], 1
    %2157 = vsyncpa %s2156, 1

</llo_original>
